<compile_context>
chip_gen: v5e
topology: v5e:2x2
jax: 0.10.0
libtpu: 0.0.40
codegen_flags: <defaults>
</compile_context>

<pallas_src>
import functools
import math

import jax
import jax.numpy as jnp
from jax.experimental import pallas as pl
from jax.experimental.pallas import tpu as pltpu


# ----------------------------------------------------------------------------
# Fused Pallas kernel: 5 QConv layers + MLP head, everything VMEM-resident.
# ----------------------------------------------------------------------------
def qgnn_kernel(h0_ref, we_ref, gather_ref, scatter_ref,
                w1h_ref, w1w_ref, w2h_ref, w2n_ref, b2_ref,
                l1w_ref, l1b_ref, l2w_ref, l2b_ref,
                out_ref):
    h = h0_ref[...]                                  # (N, F)  F = h_feats (layer-1 cols zero-padded)
    gather = gather_ref[...]                         # (E, N)  one-hot at src(e)
    scatter = scatter_ref[...]                       # (N, E)  1/in_deg(v) at dst(e)=v
    we = we_ref[...]                                 # (E, 3)  edge features
    # Hoist the three edge-feature columns out of the layer loop (VPU operands).
    we_cols = [we[:, k:k + 1] for k in range(3)]     # 3 x (E, 1)

    n_layers = w1h_ref.shape[0]
    for l in range(n_layers):                        # static unroll (5 layers)
        # message: gather source-node features per edge            -> (E, F)
        h_src = jnp.dot(gather, h, preferred_element_type=jnp.float32)
        # linear1 (no bias), split: MXU part (K=F) + VPU part (K=3 as 3 MACs)
        tmp = jnp.dot(h_src, w1h_ref[l], preferred_element_type=jnp.float32)
        w1w = w1w_ref[l]                             # (3, inter)
        for k in range(3):
            tmp = tmp + we_cols[k] * w1w[k:k + 1, :]
        # leaky_relu (PyTorch default negative_slope = 0.01)
        tmp = jnp.where(tmp >= 0.0, tmp, 0.01 * tmp)
        # reduce: mean over incoming edges per node                 -> (N, inter)
        h_n = jnp.dot(scatter, tmp, preferred_element_type=jnp.float32)
        # linear2 on [h, h_N] (split matmul) + bias, then relu      -> (N, h_feats)
        h = jnp.maximum(
            jnp.dot(h, w2h_ref[l], preferred_element_type=jnp.float32)
            + jnp.dot(h_n, w2n_ref[l], preferred_element_type=jnp.float32)
            + b2_ref[l],
            0.0)

    # MLP head: relu(h @ L1 + b1) @ L2 + b2
    hm = jnp.maximum(
        jnp.dot(h, l1w_ref[...], preferred_element_type=jnp.float32) + l1b_ref[...],
        0.0)
    out_ref[...] = (jnp.dot(hm, l2w_ref[...], preferred_element_type=jnp.float32)
                    + l2b_ref[...])


def qgnn_pallas(h0, w_edge, gather, scatter_mean, params):
    n_nodes = h0.shape[0]
    num_classes = params["l2w"].shape[1]
    args = (h0, w_edge, gather, scatter_mean,
            params["w1h"], params["w1w"], params["w2h"], params["w2n"], params["b2"],
            params["l1w"], params["l1b"], params["l2w"], params["l2b"])
    vmem_spec = pl.BlockSpec(memory_space=pltpu.MemorySpace.VMEM)
    return pl.pallas_call(
        qgnn_kernel,
        in_specs=[vmem_spec] * len(args),
        out_specs=vmem_spec,
        out_shape=jax.ShapeDtypeStruct((n_nodes, num_classes), jnp.float32),
    )(*args)


# ----------------------------------------------------------------------------
# Parameter init (deterministic, mirrors the module's shapes / xavier_normal)
# ----------------------------------------------------------------------------
def xavier_normal(key, out_dim, in_dim, gain):
    std = gain * math.sqrt(2.0 / (in_dim + out_dim))
    return std * jax.random.normal(key, (out_dim, in_dim), dtype=jnp.float32)


def make_qconv_params(key, in_feat, inter_dim, out_feat):
    gain = math.sqrt(2.0)  # nn.init.calculate_gain('relu')
    k1, k2, k3 = jax.random.split(key, 3)
    # PyTorch stores weights as (out, in); the kernel consumes (in, out).
    w1 = xavier_normal(k1, inter_dim, in_feat + 3, gain)         # linear1, no bias
    w2 = xavier_normal(k2, out_feat, in_feat + inter_dim, gain)  # linear2
    b2 = (1.0 / math.sqrt(in_feat + inter_dim)) * \
        jax.random.uniform(k3, (1, out_feat), jnp.float32, -1.0, 1.0)
    return {
        "w1h": jnp.transpose(w1[:, :in_feat]),     # (in_feat, inter)
        "w1w": jnp.transpose(w1[:, in_feat:]),     # (3, inter)
        "w2h": jnp.transpose(w2[:, :in_feat]),     # (in_feat, out_feat)
        "w2n": jnp.transpose(w2[:, in_feat:]),     # (inter, out_feat)
        "b2": b2,                                  # (1, out_feat)
    }


def make_head_params(key, h_feats, num_classes):
    gain = math.sqrt(2.0)
    k1, k2, k3, k4 = jax.random.split(key, 4)
    l1 = xavier_normal(k1, h_feats, h_feats, gain)
    l2 = xavier_normal(k2, num_classes, h_feats, gain)
    return {
        "l1w": jnp.transpose(l1),                                        # (h, h)
        "l1b": (1.0 / math.sqrt(h_feats)) *
               jax.random.uniform(k3, (1, h_feats), jnp.float32, -1.0, 1.0),
        "l2w": jnp.transpose(l2),                                        # (h, C)
        "l2b": (1.0 / math.sqrt(h_feats)) *
               jax.random.uniform(k4, (1, num_classes), jnp.float32, -1.0, 1.0),
    }


def make_qgnn_params(key, in_feats, h_feats, num_classes, inter_dim):
    """Faithful per-layer init, then zero-pad layer-1's node-side weights to
    h_feats rows and stack all 5 layers along a leading axis (exact: the padded
    h0 columns are zero, so the extra zero weight rows contribute nothing)."""
    assert in_feats <= h_feats, "layer-1 padding scheme assumes in_feats <= h_feats"
    keys = jax.random.split(key, 7)
    emb = jax.random.normal(keys[0], (in_feats, in_feats), jnp.float32)

    layer_in = [in_feats, h_feats, h_feats, h_feats, h_feats]
    w1h_l, w1w_l, w2h_l, w2n_l, b2_l = [], [], [], [], []
    for i, fin in enumerate(layer_in):
        p = make_qconv_params(keys[1 + i], fin, inter_dim, h_feats)
        pad = h_feats - fin
        w1h_l.append(jnp.pad(p["w1h"], ((0, pad), (0, 0))))   # (h_feats, inter)
        w2h_l.append(jnp.pad(p["w2h"], ((0, pad), (0, 0))))   # (h_feats, h_feats)
        w1w_l.append(p["w1w"])                                 # (3, inter)
        w2n_l.append(p["w2n"])                                 # (inter, h_feats)
        b2_l.append(p["b2"])                                   # (1, h_feats)

    head = make_head_params(keys[6], h_feats, num_classes)
    return {
        "embedding": emb,
        "w1h": jnp.stack(w1h_l),   # (5, h_feats, inter)
        "w1w": jnp.stack(w1w_l),   # (5, 3, inter)
        "w2h": jnp.stack(w2h_l),   # (5, h_feats, h_feats)
        "w2n": jnp.stack(w2n_l),   # (5, inter, h_feats)
        "b2": jnp.stack(b2_l),     # (5, 1, h_feats)
        **head,
    }


# ----------------------------------------------------------------------------
# Full QGNN forward (glue in plain JAX, entire hot path in one Pallas kernel)
# ----------------------------------------------------------------------------
def qgnn_forward(gate_type, src, dst, edata, params):
    n_nodes = gate_type.shape[0]
    in_feats = params["embedding"].shape[1]
    h_feats = params["l1w"].shape[0]

    # Embedding lookup (glue).  TODO(synk): could be folded in-kernel as a
    # one-hot matmul if the lookup ever matters.
    h0 = jnp.take(params["embedding"], gate_type, axis=0)          # (N, in_feats)
    h0 = jnp.pad(h0, ((0, 0), (0, h_feats - in_feats)))            # (N, h_feats)

    # Edge features w = [src_idx, dst_idx, reversed]  -> (E, 3)
    w_edge = edata.astype(jnp.float32)

    # Dense gather (E, N): row e is one-hot at src(e).
    # Dense scatter-mean (N, E): entry [v, e] = 1/in_deg(v) if dst(e) == v.
    # TODO(synk): replace the dense one-hot formulation with scalar-prefetch
    # index gather / per-node accumulation if graphs grow beyond toy size
    # (O(E*N) bytes and O(E*N*F) FLOPs today; fine at E=24, N=16).
    gather = jax.nn.one_hot(src, n_nodes, dtype=jnp.float32)       # (E, N)
    in_deg = jnp.zeros((n_nodes,), jnp.float32).at[dst].add(1.0)
    inv_deg = jnp.where(in_deg > 0, 1.0 / jnp.maximum(in_deg, 1.0), 0.0)
    scatter_mean = jax.nn.one_hot(dst, n_nodes, dtype=jnp.float32).T * inv_deg[:, None]

    return qgnn_pallas(h0, w_edge, gather, scatter_mean, params)


if __name__ == "__main__":
    # Small synthetic graph consistent with the module.
    in_feats, h_feats, num_classes, inter_dim = 8, 32, 4, 16
    n_nodes, n_edges = 16, 24

    root = jax.random.PRNGKey(0)
    k_par, k_gt, k_src, k_dst, k_si, k_di = jax.random.split(root, 6)

    params = make_qgnn_params(k_par, in_feats, h_feats, num_classes, inter_dim)

    # Graph structure + node/edge data (deterministic).
    gate_type = jax.random.randint(k_gt, (n_nodes,), 0, in_feats)
    src = jax.random.randint(k_src, (n_edges,), 0, n_nodes)
    dst = jax.random.randint(k_dst, (n_edges,), 0, n_nodes)
    src_idx = jax.random.randint(k_si, (n_edges,), 0, 4).astype(jnp.float32)
    dst_idx = jax.random.randint(k_di, (n_edges,), 0, 4).astype(jnp.float32)
    reversed_flag = (jnp.arange(n_edges) % 2).astype(jnp.float32)
    edata = jnp.stack([src_idx, dst_idx, reversed_flag], axis=1)   # (E, 3)

    fwd = jax.jit(qgnn_forward)
    out = fwd(gate_type, src, dst, edata, params)
    out = jax.block_until_ready(out)
    assert out.shape == (n_nodes, num_classes) and out.dtype == jnp.float32
    assert bool(jnp.all(jnp.isfinite(out)))
    print("KERNEL_OK")
</pallas_src>

<mosaic_0001>
module attributes {stable_mosaic.version = 11 : i64} {
  func.func @qgnn_kernel(%arg0: memref<16x32xf32, #tpu.memory_space<vmem>>, %arg1: memref<24x3xf32, #tpu.memory_space<vmem>>, %arg2: memref<24x16xf32, #tpu.memory_space<vmem>>, %arg3: memref<16x24xf32, #tpu.memory_space<vmem>>, %arg4: memref<5x32x16xf32, #tpu.memory_space<vmem>>, %arg5: memref<5x3x16xf32, #tpu.memory_space<vmem>>, %arg6: memref<5x32x32xf32, #tpu.memory_space<vmem>>, %arg7: memref<5x16x32xf32, #tpu.memory_space<vmem>>, %arg8: memref<5x1x32xf32, #tpu.memory_space<vmem>>, %arg9: memref<32x32xf32, #tpu.memory_space<vmem>>, %arg10: memref<1x32xf32, #tpu.memory_space<vmem>>, %arg11: memref<32x4xf32, #tpu.memory_space<vmem>>, %arg12: memref<1x4xf32, #tpu.memory_space<vmem>>, %arg13: memref<16x4xf32, #tpu.memory_space<vmem>>) attributes {dimension_semantics = [], scalar_prefetch = 0 : i64, scratch_operands = 0 : i64, tpu.core_type = #tpu.core_type<tc>} {
    %c0 = arith.constant 0 : index
    %c0_0 = arith.constant 0 : index
    %0 = vector.load %arg0[%c0, %c0_0] : memref<16x32xf32, #tpu.memory_space<vmem>>, vector<16x32xf32>
    %c0_1 = arith.constant 0 : index
    %c0_2 = arith.constant 0 : index
    %1 = vector.load %arg2[%c0_1, %c0_2] : memref<24x16xf32, #tpu.memory_space<vmem>>, vector<24x16xf32>
    %c0_3 = arith.constant 0 : index
    %c0_4 = arith.constant 0 : index
    %2 = vector.load %arg3[%c0_3, %c0_4] : memref<16x24xf32, #tpu.memory_space<vmem>>, vector<16x24xf32>
    %c0_5 = arith.constant 0 : index
    %c0_6 = arith.constant 0 : index
    %3 = vector.load %arg1[%c0_5, %c0_6] : memref<24x3xf32, #tpu.memory_space<vmem>>, vector<24x3xf32>
    %4 = vector.extract_strided_slice %3 {offsets = [0, 0], sizes = [24, 1], strides = [1, 1]} : vector<24x3xf32> to vector<24x1xf32>
    %5 = vector.extract_strided_slice %3 {offsets = [0, 1], sizes = [24, 1], strides = [1, 1]} : vector<24x3xf32> to vector<24x1xf32>
    %6 = vector.extract_strided_slice %3 {offsets = [0, 2], sizes = [24, 1], strides = [1, 1]} : vector<24x3xf32> to vector<24x1xf32>
    %cst = arith.constant dense<0.000000e+00> : vector<24x32xf32>
    %7 = tpu.matmul %1, %0, %cst {dimension_numbers = #tpu.dot_dimension_numbers<[1], [0], [0], [1], [0, 0, 1, 1], [], []>} : vector<24x16xf32>, vector<16x32xf32>, vector<24x32xf32> -> vector<24x32xf32>
    %c0_7 = arith.constant 0 : index
    %c0_8 = arith.constant 0 : index
    %c0_9 = arith.constant 0 : index
    %8 = vector.load %arg4[%c0_7, %c0_8, %c0_9] : memref<5x32x16xf32, #tpu.memory_space<vmem>>, vector<1x32x16xf32>
    %9 = vector.shape_cast %8 : vector<1x32x16xf32> to vector<32x16xf32>
    %cst_10 = arith.constant dense<0.000000e+00> : vector<24x16xf32>
    %10 = tpu.matmul %7, %9, %cst_10 {dimension_numbers = #tpu.dot_dimension_numbers<[1], [0], [0], [1], [0, 0, 1, 1], [], []>} : vector<24x32xf32>, vector<32x16xf32>, vector<24x16xf32> -> vector<24x16xf32>
    %c0_11 = arith.constant 0 : index
    %c0_12 = arith.constant 0 : index
    %c0_13 = arith.constant 0 : index
    %11 = vector.load %arg5[%c0_11, %c0_12, %c0_13] : memref<5x3x16xf32, #tpu.memory_space<vmem>>, vector<1x3x16xf32>
    %12 = vector.shape_cast %11 : vector<1x3x16xf32> to vector<3x16xf32>
    %13 = vector.extract_strided_slice %12 {offsets = [0, 0], sizes = [1, 16], strides = [1, 1]} : vector<3x16xf32> to vector<1x16xf32>
    %14 = vector.broadcast %4 : vector<24x1xf32> to vector<24x16xf32>
    %15 = vector.broadcast %13 : vector<1x16xf32> to vector<24x16xf32>
    %16 = arith.mulf %14, %15 : vector<24x16xf32>
    %17 = arith.addf %10, %16 : vector<24x16xf32>
    %18 = vector.extract_strided_slice %12 {offsets = [1, 0], sizes = [1, 16], strides = [1, 1]} : vector<3x16xf32> to vector<1x16xf32>
    %19 = vector.broadcast %5 : vector<24x1xf32> to vector<24x16xf32>
    %20 = vector.broadcast %18 : vector<1x16xf32> to vector<24x16xf32>
    %21 = arith.mulf %19, %20 : vector<24x16xf32>
    %22 = arith.addf %17, %21 : vector<24x16xf32>
    %23 = vector.extract_strided_slice %12 {offsets = [2, 0], sizes = [1, 16], strides = [1, 1]} : vector<3x16xf32> to vector<1x16xf32>
    %24 = vector.broadcast %6 : vector<24x1xf32> to vector<24x16xf32>
    %25 = vector.broadcast %23 : vector<1x16xf32> to vector<24x16xf32>
    %26 = arith.mulf %24, %25 : vector<24x16xf32>
    %27 = arith.addf %22, %26 : vector<24x16xf32>
    %cst_14 = arith.constant 0.000000e+00 : f32
    %28 = vector.broadcast %cst_14 : f32 to vector<24x16xf32>
    %29 = arith.cmpf oge, %27, %28 : vector<24x16xf32>
    %cst_15 = arith.constant 0.00999999977 : f32
    %30 = vector.broadcast %cst_15 : f32 to vector<24x16xf32>
    %31 = arith.mulf %30, %27 : vector<24x16xf32>
    %32 = arith.select %29, %27, %31 : vector<24x16xi1>, vector<24x16xf32>
    %cst_16 = arith.constant dense<0.000000e+00> : vector<16x16xf32>
    %33 = tpu.matmul %2, %32, %cst_16 {dimension_numbers = #tpu.dot_dimension_numbers<[1], [0], [0], [1], [0, 0, 1, 1], [], []>} : vector<16x24xf32>, vector<24x16xf32>, vector<16x16xf32> -> vector<16x16xf32>
    %c0_17 = arith.constant 0 : index
    %c0_18 = arith.constant 0 : index
    %c0_19 = arith.constant 0 : index
    %34 = vector.load %arg6[%c0_17, %c0_18, %c0_19] : memref<5x32x32xf32, #tpu.memory_space<vmem>>, vector<1x32x32xf32>
    %35 = vector.shape_cast %34 : vector<1x32x32xf32> to vector<32x32xf32>
    %cst_20 = arith.constant dense<0.000000e+00> : vector<16x32xf32>
    %36 = tpu.matmul %0, %35, %cst_20 {dimension_numbers = #tpu.dot_dimension_numbers<[1], [0], [0], [1], [0, 0, 1, 1], [], []>} : vector<16x32xf32>, vector<32x32xf32>, vector<16x32xf32> -> vector<16x32xf32>
    %c0_21 = arith.constant 0 : index
    %c0_22 = arith.constant 0 : index
    %c0_23 = arith.constant 0 : index
    %37 = vector.load %arg7[%c0_21, %c0_22, %c0_23] : memref<5x16x32xf32, #tpu.memory_space<vmem>>, vector<1x16x32xf32>
    %38 = vector.shape_cast %37 : vector<1x16x32xf32> to vector<16x32xf32>
    %cst_24 = arith.constant dense<0.000000e+00> : vector<16x32xf32>
    %39 = tpu.matmul %33, %38, %cst_24 {dimension_numbers = #tpu.dot_dimension_numbers<[1], [0], [0], [1], [0, 0, 1, 1], [], []>} : vector<16x16xf32>, vector<16x32xf32>, vector<16x32xf32> -> vector<16x32xf32>
    %40 = arith.addf %36, %39 : vector<16x32xf32>
    %c0_25 = arith.constant 0 : index
    %c0_26 = arith.constant 0 : index
    %c0_27 = arith.constant 0 : index
    %41 = vector.load %arg8[%c0_25, %c0_26, %c0_27] : memref<5x1x32xf32, #tpu.memory_space<vmem>>, vector<1x1x32xf32>
    %42 = vector.shape_cast %41 : vector<1x1x32xf32> to vector<1x32xf32>
    %43 = vector.broadcast %42 : vector<1x32xf32> to vector<16x32xf32>
    %44 = arith.addf %40, %43 : vector<16x32xf32>
    %cst_28 = arith.constant 0.000000e+00 : f32
    %45 = vector.broadcast %cst_28 : f32 to vector<16x32xf32>
    %46 = arith.maximumf %44, %45 : vector<16x32xf32>
    %cst_29 = arith.constant dense<0.000000e+00> : vector<24x32xf32>
    %47 = tpu.matmul %1, %46, %cst_29 {dimension_numbers = #tpu.dot_dimension_numbers<[1], [0], [0], [1], [0, 0, 1, 1], [], []>} : vector<24x16xf32>, vector<16x32xf32>, vector<24x32xf32> -> vector<24x32xf32>
    %c1 = arith.constant 1 : index
    %c0_30 = arith.constant 0 : index
    %c0_31 = arith.constant 0 : index
    %48 = vector.load %arg4[%c1, %c0_30, %c0_31] : memref<5x32x16xf32, #tpu.memory_space<vmem>>, vector<1x32x16xf32>
    %49 = vector.shape_cast %48 : vector<1x32x16xf32> to vector<32x16xf32>
    %cst_32 = arith.constant dense<0.000000e+00> : vector<24x16xf32>
    %50 = tpu.matmul %47, %49, %cst_32 {dimension_numbers = #tpu.dot_dimension_numbers<[1], [0], [0], [1], [0, 0, 1, 1], [], []>} : vector<24x32xf32>, vector<32x16xf32>, vector<24x16xf32> -> vector<24x16xf32>
    %c1_33 = arith.constant 1 : index
    %c0_34 = arith.constant 0 : index
    %c0_35 = arith.constant 0 : index
    %51 = vector.load %arg5[%c1_33, %c0_34, %c0_35] : memref<5x3x16xf32, #tpu.memory_space<vmem>>, vector<1x3x16xf32>
    %52 = vector.shape_cast %51 : vector<1x3x16xf32> to vector<3x16xf32>
    %53 = vector.extract_strided_slice %52 {offsets = [0, 0], sizes = [1, 16], strides = [1, 1]} : vector<3x16xf32> to vector<1x16xf32>
    %54 = vector.broadcast %4 : vector<24x1xf32> to vector<24x16xf32>
    %55 = vector.broadcast %53 : vector<1x16xf32> to vector<24x16xf32>
    %56 = arith.mulf %54, %55 : vector<24x16xf32>
    %57 = arith.addf %50, %56 : vector<24x16xf32>
    %58 = vector.extract_strided_slice %52 {offsets = [1, 0], sizes = [1, 16], strides = [1, 1]} : vector<3x16xf32> to vector<1x16xf32>
    %59 = vector.broadcast %5 : vector<24x1xf32> to vector<24x16xf32>
    %60 = vector.broadcast %58 : vector<1x16xf32> to vector<24x16xf32>
    %61 = arith.mulf %59, %60 : vector<24x16xf32>
    %62 = arith.addf %57, %61 : vector<24x16xf32>
    %63 = vector.extract_strided_slice %52 {offsets = [2, 0], sizes = [1, 16], strides = [1, 1]} : vector<3x16xf32> to vector<1x16xf32>
    %64 = vector.broadcast %6 : vector<24x1xf32> to vector<24x16xf32>
    %65 = vector.broadcast %63 : vector<1x16xf32> to vector<24x16xf32>
    %66 = arith.mulf %64, %65 : vector<24x16xf32>
    %67 = arith.addf %62, %66 : vector<24x16xf32>
    %cst_36 = arith.constant 0.000000e+00 : f32
    %68 = vector.broadcast %cst_36 : f32 to vector<24x16xf32>
    %69 = arith.cmpf oge, %67, %68 : vector<24x16xf32>
    %cst_37 = arith.constant 0.00999999977 : f32
    %70 = vector.broadcast %cst_37 : f32 to vector<24x16xf32>
    %71 = arith.mulf %70, %67 : vector<24x16xf32>
    %72 = arith.select %69, %67, %71 : vector<24x16xi1>, vector<24x16xf32>
    %cst_38 = arith.constant dense<0.000000e+00> : vector<16x16xf32>
    %73 = tpu.matmul %2, %72, %cst_38 {dimension_numbers = #tpu.dot_dimension_numbers<[1], [0], [0], [1], [0, 0, 1, 1], [], []>} : vector<16x24xf32>, vector<24x16xf32>, vector<16x16xf32> -> vector<16x16xf32>
    %c1_39 = arith.constant 1 : index
    %c0_40 = arith.constant 0 : index
    %c0_41 = arith.constant 0 : index
    %74 = vector.load %arg6[%c1_39, %c0_40, %c0_41] : memref<5x32x32xf32, #tpu.memory_space<vmem>>, vector<1x32x32xf32>
    %75 = vector.shape_cast %74 : vector<1x32x32xf32> to vector<32x32xf32>
    %cst_42 = arith.constant dense<0.000000e+00> : vector<16x32xf32>
    %76 = tpu.matmul %46, %75, %cst_42 {dimension_numbers = #tpu.dot_dimension_numbers<[1], [0], [0], [1], [0, 0, 1, 1], [], []>} : vector<16x32xf32>, vector<32x32xf32>, vector<16x32xf32> -> vector<16x32xf32>
    %c1_43 = arith.constant 1 : index
    %c0_44 = arith.constant 0 : index
    %c0_45 = arith.constant 0 : index
    %77 = vector.load %arg7[%c1_43, %c0_44, %c0_45] : memref<5x16x32xf32, #tpu.memory_space<vmem>>, vector<1x16x32xf32>
    %78 = vector.shape_cast %77 : vector<1x16x32xf32> to vector<16x32xf32>
    %cst_46 = arith.constant dense<0.000000e+00> : vector<16x32xf32>
    %79 = tpu.matmul %73, %78, %cst_46 {dimension_numbers = #tpu.dot_dimension_numbers<[1], [0], [0], [1], [0, 0, 1, 1], [], []>} : vector<16x16xf32>, vector<16x32xf32>, vector<16x32xf32> -> vector<16x32xf32>
    %80 = arith.addf %76, %79 : vector<16x32xf32>
    %c1_47 = arith.constant 1 : index
    %c0_48 = arith.constant 0 : index
    %c0_49 = arith.constant 0 : index
    %81 = vector.load %arg8[%c1_47, %c0_48, %c0_49] : memref<5x1x32xf32, #tpu.memory_space<vmem>>, vector<1x1x32xf32>
    %82 = vector.shape_cast %81 : vector<1x1x32xf32> to vector<1x32xf32>
    %83 = vector.broadcast %82 : vector<1x32xf32> to vector<16x32xf32>
    %84 = arith.addf %80, %83 : vector<16x32xf32>
    %cst_50 = arith.constant 0.000000e+00 : f32
    %85 = vector.broadcast %cst_50 : f32 to vector<16x32xf32>
    %86 = arith.maximumf %84, %85 : vector<16x32xf32>
    %cst_51 = arith.constant dense<0.000000e+00> : vector<24x32xf32>
    %87 = tpu.matmul %1, %86, %cst_51 {dimension_numbers = #tpu.dot_dimension_numbers<[1], [0], [0], [1], [0, 0, 1, 1], [], []>} : vector<24x16xf32>, vector<16x32xf32>, vector<24x32xf32> -> vector<24x32xf32>
    %c2 = arith.constant 2 : index
    %c0_52 = arith.constant 0 : index
    %c0_53 = arith.constant 0 : index
    %88 = vector.load %arg4[%c2, %c0_52, %c0_53] : memref<5x32x16xf32, #tpu.memory_space<vmem>>, vector<1x32x16xf32>
    %89 = vector.shape_cast %88 : vector<1x32x16xf32> to vector<32x16xf32>
    %cst_54 = arith.constant dense<0.000000e+00> : vector<24x16xf32>
    %90 = tpu.matmul %87, %89, %cst_54 {dimension_numbers = #tpu.dot_dimension_numbers<[1], [0], [0], [1], [0, 0, 1, 1], [], []>} : vector<24x32xf32>, vector<32x16xf32>, vector<24x16xf32> -> vector<24x16xf32>
    %c2_55 = arith.constant 2 : index
    %c0_56 = arith.constant 0 : index
    %c0_57 = arith.constant 0 : index
    %91 = vector.load %arg5[%c2_55, %c0_56, %c0_57] : memref<5x3x16xf32, #tpu.memory_space<vmem>>, vector<1x3x16xf32>
    %92 = vector.shape_cast %91 : vector<1x3x16xf32> to vector<3x16xf32>
    %93 = vector.extract_strided_slice %92 {offsets = [0, 0], sizes = [1, 16], strides = [1, 1]} : vector<3x16xf32> to vector<1x16xf32>
    %94 = vector.broadcast %4 : vector<24x1xf32> to vector<24x16xf32>
    %95 = vector.broadcast %93 : vector<1x16xf32> to vector<24x16xf32>
    %96 = arith.mulf %94, %95 : vector<24x16xf32>
    %97 = arith.addf %90, %96 : vector<24x16xf32>
    %98 = vector.extract_strided_slice %92 {offsets = [1, 0], sizes = [1, 16], strides = [1, 1]} : vector<3x16xf32> to vector<1x16xf32>
    %99 = vector.broadcast %5 : vector<24x1xf32> to vector<24x16xf32>
    %100 = vector.broadcast %98 : vector<1x16xf32> to vector<24x16xf32>
    %101 = arith.mulf %99, %100 : vector<24x16xf32>
    %102 = arith.addf %97, %101 : vector<24x16xf32>
    %103 = vector.extract_strided_slice %92 {offsets = [2, 0], sizes = [1, 16], strides = [1, 1]} : vector<3x16xf32> to vector<1x16xf32>
    %104 = vector.broadcast %6 : vector<24x1xf32> to vector<24x16xf32>
    %105 = vector.broadcast %103 : vector<1x16xf32> to vector<24x16xf32>
    %106 = arith.mulf %104, %105 : vector<24x16xf32>
    %107 = arith.addf %102, %106 : vector<24x16xf32>
    %cst_58 = arith.constant 0.000000e+00 : f32
    %108 = vector.broadcast %cst_58 : f32 to vector<24x16xf32>
    %109 = arith.cmpf oge, %107, %108 : vector<24x16xf32>
    %cst_59 = arith.constant 0.00999999977 : f32
    %110 = vector.broadcast %cst_59 : f32 to vector<24x16xf32>
    %111 = arith.mulf %110, %107 : vector<24x16xf32>
    %112 = arith.select %109, %107, %111 : vector<24x16xi1>, vector<24x16xf32>
    %cst_60 = arith.constant dense<0.000000e+00> : vector<16x16xf32>
    %113 = tpu.matmul %2, %112, %cst_60 {dimension_numbers = #tpu.dot_dimension_numbers<[1], [0], [0], [1], [0, 0, 1, 1], [], []>} : vector<16x24xf32>, vector<24x16xf32>, vector<16x16xf32> -> vector<16x16xf32>
    %c2_61 = arith.constant 2 : index
    %c0_62 = arith.constant 0 : index
    %c0_63 = arith.constant 0 : index
    %114 = vector.load %arg6[%c2_61, %c0_62, %c0_63] : memref<5x32x32xf32, #tpu.memory_space<vmem>>, vector<1x32x32xf32>
    %115 = vector.shape_cast %114 : vector<1x32x32xf32> to vector<32x32xf32>
    %cst_64 = arith.constant dense<0.000000e+00> : vector<16x32xf32>
    %116 = tpu.matmul %86, %115, %cst_64 {dimension_numbers = #tpu.dot_dimension_numbers<[1], [0], [0], [1], [0, 0, 1, 1], [], []>} : vector<16x32xf32>, vector<32x32xf32>, vector<16x32xf32> -> vector<16x32xf32>
    %c2_65 = arith.constant 2 : index
    %c0_66 = arith.constant 0 : index
    %c0_67 = arith.constant 0 : index
    %117 = vector.load %arg7[%c2_65, %c0_66, %c0_67] : memref<5x16x32xf32, #tpu.memory_space<vmem>>, vector<1x16x32xf32>
    %118 = vector.shape_cast %117 : vector<1x16x32xf32> to vector<16x32xf32>
    %cst_68 = arith.constant dense<0.000000e+00> : vector<16x32xf32>
    %119 = tpu.matmul %113, %118, %cst_68 {dimension_numbers = #tpu.dot_dimension_numbers<[1], [0], [0], [1], [0, 0, 1, 1], [], []>} : vector<16x16xf32>, vector<16x32xf32>, vector<16x32xf32> -> vector<16x32xf32>
    %120 = arith.addf %116, %119 : vector<16x32xf32>
    %c2_69 = arith.constant 2 : index
    %c0_70 = arith.constant 0 : index
    %c0_71 = arith.constant 0 : index
    %121 = vector.load %arg8[%c2_69, %c0_70, %c0_71] : memref<5x1x32xf32, #tpu.memory_space<vmem>>, vector<1x1x32xf32>
    %122 = vector.shape_cast %121 : vector<1x1x32xf32> to vector<1x32xf32>
    %123 = vector.broadcast %122 : vector<1x32xf32> to vector<16x32xf32>
    %124 = arith.addf %120, %123 : vector<16x32xf32>
    %cst_72 = arith.constant 0.000000e+00 : f32
    %125 = vector.broadcast %cst_72 : f32 to vector<16x32xf32>
    %126 = arith.maximumf %124, %125 : vector<16x32xf32>
    %cst_73 = arith.constant dense<0.000000e+00> : vector<24x32xf32>
    %127 = tpu.matmul %1, %126, %cst_73 {dimension_numbers = #tpu.dot_dimension_numbers<[1], [0], [0], [1], [0, 0, 1, 1], [], []>} : vector<24x16xf32>, vector<16x32xf32>, vector<24x32xf32> -> vector<24x32xf32>
    %c3 = arith.constant 3 : index
    %c0_74 = arith.constant 0 : index
    %c0_75 = arith.constant 0 : index
    %128 = vector.load %arg4[%c3, %c0_74, %c0_75] : memref<5x32x16xf32, #tpu.memory_space<vmem>>, vector<1x32x16xf32>
    %129 = vector.shape_cast %128 : vector<1x32x16xf32> to vector<32x16xf32>
    %cst_76 = arith.constant dense<0.000000e+00> : vector<24x16xf32>
    %130 = tpu.matmul %127, %129, %cst_76 {dimension_numbers = #tpu.dot_dimension_numbers<[1], [0], [0], [1], [0, 0, 1, 1], [], []>} : vector<24x32xf32>, vector<32x16xf32>, vector<24x16xf32> -> vector<24x16xf32>
    %c3_77 = arith.constant 3 : index
    %c0_78 = arith.constant 0 : index
    %c0_79 = arith.constant 0 : index
    %131 = vector.load %arg5[%c3_77, %c0_78, %c0_79] : memref<5x3x16xf32, #tpu.memory_space<vmem>>, vector<1x3x16xf32>
    %132 = vector.shape_cast %131 : vector<1x3x16xf32> to vector<3x16xf32>
    %133 = vector.extract_strided_slice %132 {offsets = [0, 0], sizes = [1, 16], strides = [1, 1]} : vector<3x16xf32> to vector<1x16xf32>
    %134 = vector.broadcast %4 : vector<24x1xf32> to vector<24x16xf32>
    %135 = vector.broadcast %133 : vector<1x16xf32> to vector<24x16xf32>
    %136 = arith.mulf %134, %135 : vector<24x16xf32>
    %137 = arith.addf %130, %136 : vector<24x16xf32>
    %138 = vector.extract_strided_slice %132 {offsets = [1, 0], sizes = [1, 16], strides = [1, 1]} : vector<3x16xf32> to vector<1x16xf32>
    %139 = vector.broadcast %5 : vector<24x1xf32> to vector<24x16xf32>
    %140 = vector.broadcast %138 : vector<1x16xf32> to vector<24x16xf32>
    %141 = arith.mulf %139, %140 : vector<24x16xf32>
    %142 = arith.addf %137, %141 : vector<24x16xf32>
    %143 = vector.extract_strided_slice %132 {offsets = [2, 0], sizes = [1, 16], strides = [1, 1]} : vector<3x16xf32> to vector<1x16xf32>
    %144 = vector.broadcast %6 : vector<24x1xf32> to vector<24x16xf32>
    %145 = vector.broadcast %143 : vector<1x16xf32> to vector<24x16xf32>
    %146 = arith.mulf %144, %145 : vector<24x16xf32>
    %147 = arith.addf %142, %146 : vector<24x16xf32>
    %cst_80 = arith.constant 0.000000e+00 : f32
    %148 = vector.broadcast %cst_80 : f32 to vector<24x16xf32>
    %149 = arith.cmpf oge, %147, %148 : vector<24x16xf32>
    %cst_81 = arith.constant 0.00999999977 : f32
    %150 = vector.broadcast %cst_81 : f32 to vector<24x16xf32>
    %151 = arith.mulf %150, %147 : vector<24x16xf32>
    %152 = arith.select %149, %147, %151 : vector<24x16xi1>, vector<24x16xf32>
    %cst_82 = arith.constant dense<0.000000e+00> : vector<16x16xf32>
    %153 = tpu.matmul %2, %152, %cst_82 {dimension_numbers = #tpu.dot_dimension_numbers<[1], [0], [0], [1], [0, 0, 1, 1], [], []>} : vector<16x24xf32>, vector<24x16xf32>, vector<16x16xf32> -> vector<16x16xf32>
    %c3_83 = arith.constant 3 : index
    %c0_84 = arith.constant 0 : index
    %c0_85 = arith.constant 0 : index
    %154 = vector.load %arg6[%c3_83, %c0_84, %c0_85] : memref<5x32x32xf32, #tpu.memory_space<vmem>>, vector<1x32x32xf32>
    %155 = vector.shape_cast %154 : vector<1x32x32xf32> to vector<32x32xf32>
    %cst_86 = arith.constant dense<0.000000e+00> : vector<16x32xf32>
    %156 = tpu.matmul %126, %155, %cst_86 {dimension_numbers = #tpu.dot_dimension_numbers<[1], [0], [0], [1], [0, 0, 1, 1], [], []>} : vector<16x32xf32>, vector<32x32xf32>, vector<16x32xf32> -> vector<16x32xf32>
    %c3_87 = arith.constant 3 : index
    %c0_88 = arith.constant 0 : index
    %c0_89 = arith.constant 0 : index
    %157 = vector.load %arg7[%c3_87, %c0_88, %c0_89] : memref<5x16x32xf32, #tpu.memory_space<vmem>>, vector<1x16x32xf32>
    %158 = vector.shape_cast %157 : vector<1x16x32xf32> to vector<16x32xf32>
    %cst_90 = arith.constant dense<0.000000e+00> : vector<16x32xf32>
    %159 = tpu.matmul %153, %158, %cst_90 {dimension_numbers = #tpu.dot_dimension_numbers<[1], [0], [0], [1], [0, 0, 1, 1], [], []>} : vector<16x16xf32>, vector<16x32xf32>, vector<16x32xf32> -> vector<16x32xf32>
    %160 = arith.addf %156, %159 : vector<16x32xf32>
    %c3_91 = arith.constant 3 : index
    %c0_92 = arith.constant 0 : index
    %c0_93 = arith.constant 0 : index
    %161 = vector.load %arg8[%c3_91, %c0_92, %c0_93] : memref<5x1x32xf32, #tpu.memory_space<vmem>>, vector<1x1x32xf32>
    %162 = vector.shape_cast %161 : vector<1x1x32xf32> to vector<1x32xf32>
    %163 = vector.broadcast %162 : vector<1x32xf32> to vector<16x32xf32>
    %164 = arith.addf %160, %163 : vector<16x32xf32>
    %cst_94 = arith.constant 0.000000e+00 : f32
    %165 = vector.broadcast %cst_94 : f32 to vector<16x32xf32>
    %166 = arith.maximumf %164, %165 : vector<16x32xf32>
    %cst_95 = arith.constant dense<0.000000e+00> : vector<24x32xf32>
    %167 = tpu.matmul %1, %166, %cst_95 {dimension_numbers = #tpu.dot_dimension_numbers<[1], [0], [0], [1], [0, 0, 1, 1], [], []>} : vector<24x16xf32>, vector<16x32xf32>, vector<24x32xf32> -> vector<24x32xf32>
    %c4 = arith.constant 4 : index
    %c0_96 = arith.constant 0 : index
    %c0_97 = arith.constant 0 : index
    %168 = vector.load %arg4[%c4, %c0_96, %c0_97] : memref<5x32x16xf32, #tpu.memory_space<vmem>>, vector<1x32x16xf32>
    %169 = vector.shape_cast %168 : vector<1x32x16xf32> to vector<32x16xf32>
    %cst_98 = arith.constant dense<0.000000e+00> : vector<24x16xf32>
    %170 = tpu.matmul %167, %169, %cst_98 {dimension_numbers = #tpu.dot_dimension_numbers<[1], [0], [0], [1], [0, 0, 1, 1], [], []>} : vector<24x32xf32>, vector<32x16xf32>, vector<24x16xf32> -> vector<24x16xf32>
    %c4_99 = arith.constant 4 : index
    %c0_100 = arith.constant 0 : index
    %c0_101 = arith.constant 0 : index
    %171 = vector.load %arg5[%c4_99, %c0_100, %c0_101] : memref<5x3x16xf32, #tpu.memory_space<vmem>>, vector<1x3x16xf32>
    %172 = vector.shape_cast %171 : vector<1x3x16xf32> to vector<3x16xf32>
    %173 = vector.extract_strided_slice %172 {offsets = [0, 0], sizes = [1, 16], strides = [1, 1]} : vector<3x16xf32> to vector<1x16xf32>
    %174 = vector.broadcast %4 : vector<24x1xf32> to vector<24x16xf32>
    %175 = vector.broadcast %173 : vector<1x16xf32> to vector<24x16xf32>
    %176 = arith.mulf %174, %175 : vector<24x16xf32>
    %177 = arith.addf %170, %176 : vector<24x16xf32>
    %178 = vector.extract_strided_slice %172 {offsets = [1, 0], sizes = [1, 16], strides = [1, 1]} : vector<3x16xf32> to vector<1x16xf32>
    %179 = vector.broadcast %5 : vector<24x1xf32> to vector<24x16xf32>
    %180 = vector.broadcast %178 : vector<1x16xf32> to vector<24x16xf32>
    %181 = arith.mulf %179, %180 : vector<24x16xf32>
    %182 = arith.addf %177, %181 : vector<24x16xf32>
    %183 = vector.extract_strided_slice %172 {offsets = [2, 0], sizes = [1, 16], strides = [1, 1]} : vector<3x16xf32> to vector<1x16xf32>
    %184 = vector.broadcast %6 : vector<24x1xf32> to vector<24x16xf32>
    %185 = vector.broadcast %183 : vector<1x16xf32> to vector<24x16xf32>
    %186 = arith.mulf %184, %185 : vector<24x16xf32>
    %187 = arith.addf %182, %186 : vector<24x16xf32>
    %cst_102 = arith.constant 0.000000e+00 : f32
    %188 = vector.broadcast %cst_102 : f32 to vector<24x16xf32>
    %189 = arith.cmpf oge, %187, %188 : vector<24x16xf32>
    %cst_103 = arith.constant 0.00999999977 : f32
    %190 = vector.broadcast %cst_103 : f32 to vector<24x16xf32>
    %191 = arith.mulf %190, %187 : vector<24x16xf32>
    %192 = arith.select %189, %187, %191 : vector<24x16xi1>, vector<24x16xf32>
    %cst_104 = arith.constant dense<0.000000e+00> : vector<16x16xf32>
    %193 = tpu.matmul %2, %192, %cst_104 {dimension_numbers = #tpu.dot_dimension_numbers<[1], [0], [0], [1], [0, 0, 1, 1], [], []>} : vector<16x24xf32>, vector<24x16xf32>, vector<16x16xf32> -> vector<16x16xf32>
    %c4_105 = arith.constant 4 : index
    %c0_106 = arith.constant 0 : index
    %c0_107 = arith.constant 0 : index
    %194 = vector.load %arg6[%c4_105, %c0_106, %c0_107] : memref<5x32x32xf32, #tpu.memory_space<vmem>>, vector<1x32x32xf32>
    %195 = vector.shape_cast %194 : vector<1x32x32xf32> to vector<32x32xf32>
    %cst_108 = arith.constant dense<0.000000e+00> : vector<16x32xf32>
    %196 = tpu.matmul %166, %195, %cst_108 {dimension_numbers = #tpu.dot_dimension_numbers<[1], [0], [0], [1], [0, 0, 1, 1], [], []>} : vector<16x32xf32>, vector<32x32xf32>, vector<16x32xf32> -> vector<16x32xf32>
    %c4_109 = arith.constant 4 : index
    %c0_110 = arith.constant 0 : index
    %c0_111 = arith.constant 0 : index
    %197 = vector.load %arg7[%c4_109, %c0_110, %c0_111] : memref<5x16x32xf32, #tpu.memory_space<vmem>>, vector<1x16x32xf32>
    %198 = vector.shape_cast %197 : vector<1x16x32xf32> to vector<16x32xf32>
    %cst_112 = arith.constant dense<0.000000e+00> : vector<16x32xf32>
    %199 = tpu.matmul %193, %198, %cst_112 {dimension_numbers = #tpu.dot_dimension_numbers<[1], [0], [0], [1], [0, 0, 1, 1], [], []>} : vector<16x16xf32>, vector<16x32xf32>, vector<16x32xf32> -> vector<16x32xf32>
    %200 = arith.addf %196, %199 : vector<16x32xf32>
    %c4_113 = arith.constant 4 : index
    %c0_114 = arith.constant 0 : index
    %c0_115 = arith.constant 0 : index
    %201 = vector.load %arg8[%c4_113, %c0_114, %c0_115] : memref<5x1x32xf32, #tpu.memory_space<vmem>>, vector<1x1x32xf32>
    %202 = vector.shape_cast %201 : vector<1x1x32xf32> to vector<1x32xf32>
    %203 = vector.broadcast %202 : vector<1x32xf32> to vector<16x32xf32>
    %204 = arith.addf %200, %203 : vector<16x32xf32>
    %cst_116 = arith.constant 0.000000e+00 : f32
    %205 = vector.broadcast %cst_116 : f32 to vector<16x32xf32>
    %206 = arith.maximumf %204, %205 : vector<16x32xf32>
    %c0_117 = arith.constant 0 : index
    %c0_118 = arith.constant 0 : index
    %207 = vector.load %arg9[%c0_117, %c0_118] : memref<32x32xf32, #tpu.memory_space<vmem>>, vector<32x32xf32>
    %cst_119 = arith.constant dense<0.000000e+00> : vector<16x32xf32>
    %208 = tpu.matmul %206, %207, %cst_119 {dimension_numbers = #tpu.dot_dimension_numbers<[1], [0], [0], [1], [0, 0, 1, 1], [], []>} : vector<16x32xf32>, vector<32x32xf32>, vector<16x32xf32> -> vector<16x32xf32>
    %c0_120 = arith.constant 0 : index
    %c0_121 = arith.constant 0 : index
    %209 = vector.load %arg10[%c0_120, %c0_121] : memref<1x32xf32, #tpu.memory_space<vmem>>, vector<1x32xf32>
    %210 = vector.broadcast %209 : vector<1x32xf32> to vector<16x32xf32>
    %211 = arith.addf %208, %210 : vector<16x32xf32>
    %cst_122 = arith.constant 0.000000e+00 : f32
    %212 = vector.broadcast %cst_122 : f32 to vector<16x32xf32>
    %213 = arith.maximumf %211, %212 : vector<16x32xf32>
    %c0_123 = arith.constant 0 : index
    %c0_124 = arith.constant 0 : index
    %214 = vector.load %arg11[%c0_123, %c0_124] : memref<32x4xf32, #tpu.memory_space<vmem>>, vector<32x4xf32>
    %cst_125 = arith.constant dense<0.000000e+00> : vector<16x4xf32>
    %215 = tpu.matmul %213, %214, %cst_125 {dimension_numbers = #tpu.dot_dimension_numbers<[1], [0], [0], [1], [0, 0, 1, 1], [], []>} : vector<16x32xf32>, vector<32x4xf32>, vector<16x4xf32> -> vector<16x4xf32>
    %c0_126 = arith.constant 0 : index
    %c0_127 = arith.constant 0 : index
    %216 = vector.load %arg12[%c0_126, %c0_127] : memref<1x4xf32, #tpu.memory_space<vmem>>, vector<1x4xf32>
    %217 = vector.broadcast %216 : vector<1x4xf32> to vector<16x4xf32>
    %218 = arith.addf %215, %217 : vector<16x4xf32>
    %c0_128 = arith.constant 0 : index
    %c0_129 = arith.constant 0 : index
    %219 = vector.load %arg13[%c0_128, %c0_129] : memref<16x4xf32, #tpu.memory_space<vmem>>, vector<16x4xf32>
    tpu.vector_store %arg13[%c0_128, %c0_129], %218 {strides = array<i32>} : memref<16x4xf32, #tpu.memory_space<vmem>>, vector<16x4xf32>,
    return
  }
}

</mosaic_0001>

<llo_original>
// kernel: qgnn_forward.1
$region0: #{qgnn_forward.1}
  #allocation0 [shape = 'u32[]', space=smem, size = 0x4, offset = 0x4, fixed_abs, tag = 'smem constant byte address 0x4 - core index']
  #allocation1 [shape = 'u32[72,128]{1,0:T(1,128)}', space=vmem, size = 0x9000, scoped, tag = 'internal scratch']
  %s0 = inlined_call_operand.vmem [shape: f32[16,32], index: 0, kind: input, shape index: {}]
  %s1 = inlined_call_operand.vmem [shape: f32[24,3], index: 1, kind: input, shape index: {}]
  %s2 = inlined_call_operand.vmem [shape: f32[24,16], index: 2, kind: input, shape index: {}]
  %s3 = inlined_call_operand.vmem [shape: f32[16,24], index: 3, kind: input, shape index: {}]
  %s4 = inlined_call_operand.vmem [shape: f32[5,32,16], index: 4, kind: input, shape index: {}]
  %s5 = inlined_call_operand.vmem [shape: f32[5,3,16], index: 5, kind: input, shape index: {}]
  %s6 = inlined_call_operand.vmem [shape: f32[5,32,32], index: 6, kind: input, shape index: {}]
  %s7 = inlined_call_operand.vmem [shape: f32[5,16,32], index: 7, kind: input, shape index: {}]
  %s8 = inlined_call_operand.vmem [shape: f32[5,1,32], index: 8, kind: input, shape index: {}]
  %s9 = inlined_call_operand.vmem [shape: f32[32,32], index: 9, kind: input, shape index: {}]
  %s10 = inlined_call_operand.vmem [shape: f32[1,32], index: 10, kind: input, shape index: {}]
  %s11 = inlined_call_operand.vmem [shape: f32[32,4], index: 11, kind: input, shape index: {}]
  %s12 = inlined_call_operand.vmem [shape: f32[1,4], index: 12, kind: input, shape index: {}]
  %s13 = inlined_call_operand.vmem [shape: f32[16,4], index: 13, kind: output, shape index: {}]
  %s14 = sld [smem:[#allocation0]]
  $region62: #{qgnn_forward.1} parent=0
    _
  %s16 = ssub.s32 1, %s14
  %s17 = scalar_select 0, %s16, %s14
  // Predicated region
  $region2: #{qgnn_forward.1} parent=0 // pred_check
    _
  $region3: #{qgnn_forward.1} parent=0 // pred_check_branch
    %19 = sbr.rel (0) target = $region5
  $region4: #{qgnn_forward.1} parent=0 // pred_region
    _
  $region5: #{qgnn_forward.1} parent=0 // pred_fallthru
    _
  // Predicated region
  $region6: #{qgnn_forward.1} parent=0 // pred_check
    _
  $region7: #{qgnn_forward.1} parent=0 // pred_check_branch
    %21 = sbr.rel (0) target = $region9
  $region8: #{qgnn_forward.1} parent=0 // pred_region
    _
  $region9: #{qgnn_forward.1} parent=0 // pred_fallthru
    _
  // Predicated region
  $region10: #{qgnn_forward.1} parent=0 // pred_check
    _
  $region11: #{qgnn_forward.1} parent=0 // pred_check_branch
    %23 = sbr.rel (0) target = $region13
  $region12: #{qgnn_forward.1} parent=0 // pred_region
    _
  $region13: #{qgnn_forward.1} parent=0 // pred_fallthru
    _
  // Predicated region
  $region14: #{qgnn_forward.1} parent=0 // pred_check
    _
  $region15: #{qgnn_forward.1} parent=0 // pred_check_branch
    %25 = sbr.rel (0) target = $region17
  $region16: #{qgnn_forward.1} parent=0 // pred_region
    _
  $region17: #{qgnn_forward.1} parent=0 // pred_fallthru
    _
  // Predicated region
  $region18: #{qgnn_forward.1} parent=0 // pred_check
    _
  $region19: #{qgnn_forward.1} parent=0 // pred_check_branch
    %27 = sbr.rel (0) target = $region21
  $region20: #{qgnn_forward.1} parent=0 // pred_region
    _
  $region21: #{qgnn_forward.1} parent=0 // pred_fallthru
    _
  // Predicated region
  $region22: #{qgnn_forward.1} parent=0 // pred_check
    _
  $region23: #{qgnn_forward.1} parent=0 // pred_check_branch
    %29 = sbr.rel (0) target = $region25
  $region24: #{qgnn_forward.1} parent=0 // pred_region
    _
  $region25: #{qgnn_forward.1} parent=0 // pred_fallthru
    _
  // Predicated region
  $region26: #{qgnn_forward.1} parent=0 // pred_check
    _
  $region27: #{qgnn_forward.1} parent=0 // pred_check_branch
    %31 = sbr.rel (0) target = $region29
  $region28: #{qgnn_forward.1} parent=0 // pred_region
    _
  $region29: #{qgnn_forward.1} parent=0 // pred_fallthru
    _
  // Predicated region
  $region30: #{qgnn_forward.1} parent=0 // pred_check
    _
  $region31: #{qgnn_forward.1} parent=0 // pred_check_branch
    %33 = sbr.rel (0) target = $region33
  $region32: #{qgnn_forward.1} parent=0 // pred_region
    _
  $region33: #{qgnn_forward.1} parent=0 // pred_fallthru
    _
  // Predicated region
  $region34: #{qgnn_forward.1} parent=0 // pred_check
    _
  $region35: #{qgnn_forward.1} parent=0 // pred_check_branch
    %35 = sbr.rel (0) target = $region37
  $region36: #{qgnn_forward.1} parent=0 // pred_region
    _
  $region37: #{qgnn_forward.1} parent=0 // pred_fallthru
    _
  // Predicated region
  $region38: #{qgnn_forward.1} parent=0 // pred_check
    _
  $region39: #{qgnn_forward.1} parent=0 // pred_check_branch
    %37 = sbr.rel (0) target = $region41
  $region40: #{qgnn_forward.1} parent=0 // pred_region
    _
  $region41: #{qgnn_forward.1} parent=0 // pred_fallthru
    _
  // Predicated region
  $region42: #{qgnn_forward.1} parent=0 // pred_check
    _
  $region43: #{qgnn_forward.1} parent=0 // pred_check_branch
    %39 = sbr.rel (0) target = $region45
  $region44: #{qgnn_forward.1} parent=0 // pred_region
    _
  $region45: #{qgnn_forward.1} parent=0 // pred_fallthru
    _
  // Predicated region
  $region46: #{qgnn_forward.1} parent=0 // pred_check
    _
  $region47: #{qgnn_forward.1} parent=0 // pred_check_branch
    %41 = sbr.rel (0) target = $region49
  $region48: #{qgnn_forward.1} parent=0 // pred_region
    _
  $region49: #{qgnn_forward.1} parent=0 // pred_fallthru
    _
  // Predicated region
  $region50: #{qgnn_forward.1} parent=0 // pred_check
    _
  $region51: #{qgnn_forward.1} parent=0 // pred_check_branch
    %43 = sbr.rel (0) target = $region53
  $region52: #{qgnn_forward.1} parent=0 // pred_region
    _
  $region53: #{qgnn_forward.1} parent=0 // pred_fallthru
    _
  %v44 = vld [vmem:[%s0] sm:$0xff]
  %v45 = vld [vmem:[%s0 + $0x8] sm:$0xff]
  %v46 = vld [vmem:[%s2] sm:$0xff]
  %v47 = vld [vmem:[%s2 + $0x8] sm:$0xff]
  %v48 = vld [vmem:[%s2 + $0x10] sm:$0xff]
  %v49 = vld [vmem:[%s3] sm:$0xff]
  %v50 = vld [vmem:[%s3 + $0x8] sm:$0xff]
  %v51 = vld [vmem:[%s1] sm:$0xff]
  %v52 = vld [vmem:[%s1 + $0x8] sm:$0xff]
  %v53 = vld [vmem:[%s1 + $0x10] sm:$0xff]
  %vm54 = vcmask 130048
  %v56 = vsel %vm54, %v46, 0
  %v59 = vsel %vm54, %v47, 0
  %v62 = vsel %vm54, %v48, 0
  %64 = vmatpush.msra.mxu0 0.0
  %65 = vmatpush.msra.mxu0 0.0
  %66 = vmatpush.msra.mxu0 0.0
  %67 = vmatpush.msra.mxu0 0.0
  %68 = vmatpush.msra.mxu0 0.0
  %69 = vmatpush.msra.mxu0 0.0
  %70 = vmatpush.msra.mxu0 0.0
  %71 = vmatpush.msra.mxu0 0.0
  %72 = vmatpush.msra.mxu0 0.0
  %73 = vmatpush.msra.mxu0 0.0
  %74 = vmatpush.msra.mxu0 0.0
  %75 = vmatpush.msra.mxu0 0.0
  %76 = vmatpush.msra.mxu0 0.0
  %77 = vmatpush.msra.mxu0 0.0
  %78 = vmatpush.msra.mxu0 %v45
  %79 = vmatpush.msra.mxu0 %v44
  %80 = vmatmul.f32.gmra.mxu0 %v56
  %v81 = vpop.f32.mrf.mxu0
  %v82 = vadd.f32 0.0, %v81
  %83 = vmatmul.f32.gmra.mxu0 %v59
  %v84 = vpop.f32.mrf.mxu0
  %v85 = vadd.f32 0.0, %v84
  %86 = vmatmul.f32.gmra.mxu0 %v62
  %v87 = vpop.f32.mrf.mxu0
  %v88 = vadd.f32 0.0, %v87
  %89 = vdwg.mxu0
  %v90 = vld [vmem:[%s4] sm:$0xff]
  %v91 = vld [vmem:[%s4 + $0x8] sm:$0xff]
  %v92 = vld [vmem:[%s4 + $0x10] sm:$0xff]
  %v93 = vld [vmem:[%s4 + $0x18] sm:$0xff]
  %v94 = vld [vmem:[%s5] sm:$0x7]
  %96 = vset.pattern.permute.xlu0 0
  %97 = vperm.xlu0 %96, %v51
  %v98 = vpop.permute.xlu0 %97
  %101 = vset.pattern.permute.xlu0 0
  %102 = vperm.xlu0 %101, %v52
  %v103 = vpop.permute.xlu0 %102
  %106 = vset.pattern.permute.xlu0 0
  %107 = vperm.xlu0 %106, %v53
  %v108 = vpop.permute.xlu0 %107
  %v110 = vperm.slane %v94, 0
  %v111 = vmul.f32 %v98, %v110
  %v112 = vmul.f32 %v103, %v110
  %v113 = vmul.f32 %v108, %v110
  %vm114 = vcmask 261120
  %v116 = vsel %vm114, %v82, 0
  %v119 = vsel %vm114, %v85, 0
  %v122 = vsel %vm114, %v88, 0
  %124 = vmatpush.msra.mxu0 0.0
  %125 = vmatpush.msra.mxu0 0.0
  %126 = vmatpush.msra.mxu0 0.0
  %127 = vmatpush.msra.mxu0 0.0
  %128 = vmatpush.msra.mxu0 0.0
  %129 = vmatpush.msra.mxu0 0.0
  %130 = vmatpush.msra.mxu0 0.0
  %131 = vmatpush.msra.mxu0 0.0
  %132 = vmatpush.msra.mxu0 0.0
  %133 = vmatpush.msra.mxu0 0.0
  %134 = vmatpush.msra.mxu0 0.0
  %135 = vmatpush.msra.mxu0 0.0
  %136 = vmatpush.msra.mxu0 %v93
  %137 = vmatpush.msra.mxu0 %v92
  %138 = vmatpush.msra.mxu0 %v91
  %139 = vmatpush.msra.mxu0 %v90
  %140 = vmatmul.f32.gmra.mxu0 %v116
  %v141 = vpop.f32.mrf.mxu0
  %v142 = vadd.f32 %v111, %v141
  %143 = vmatmul.f32.gmra.mxu0 %v119
  %v144 = vpop.f32.mrf.mxu0
  %v145 = vadd.f32 %v112, %v144
  %146 = vmatmul.f32.gmra.mxu0 %v122
  %v147 = vpop.f32.mrf.mxu0
  %v148 = vadd.f32 %v113, %v147
  %149 = vdwg.mxu0
  %150 = vset.pattern.permute.xlu0 1
  %151 = vperm.xlu0 %150, %v51
  %v152 = vpop.permute.xlu0 %151
  %154 = vset.pattern.permute.xlu0 1
  %155 = vperm.xlu0 %154, %v52
  %v156 = vpop.permute.xlu0 %155
  %158 = vset.pattern.permute.xlu0 1
  %159 = vperm.xlu0 %158, %v53
  %v160 = vpop.permute.xlu0 %159
  %v162 = vperm.slane %v94, 1
  %v163 = vmul.f32 %v152, %v162
  %v164 = vmul.f32 %v156, %v162
  %v165 = vmul.f32 %v160, %v162
  %v166 = vadd.f32 %v142, %v163
  %v167 = vadd.f32 %v145, %v164
  %v168 = vadd.f32 %v148, %v165
  %169 = vset.pattern.permute.xlu0 2
  %170 = vperm.xlu0 %169, %v51
  %v171 = vpop.permute.xlu0 %170
  %173 = vset.pattern.permute.xlu0 2
  %174 = vperm.xlu0 %173, %v52
  %v175 = vpop.permute.xlu0 %174
  %177 = vset.pattern.permute.xlu0 2
  %178 = vperm.xlu0 %177, %v53
  %v179 = vpop.permute.xlu0 %178
  %v181 = vperm.slane %v94, 2
  %v182 = vmul.f32 %v171, %v181
  %v183 = vmul.f32 %v175, %v181
  %v184 = vmul.f32 %v179, %v181
  %v185 = vadd.f32 %v166, %v182
  %v186 = vadd.f32 %v167, %v183
  %v187 = vadd.f32 %v168, %v184
  %vm188 = vcmp.ge.f32.partialorder %v185, 0.0
  %vm189 = vcmp.ge.f32.partialorder %v186, 0.0
  %vm190 = vcmp.ge.f32.partialorder %v187, 0.0
  %v191 = vmul.f32 %v185, 0.01
  %v192 = vmul.f32 %v186, 0.01
  %v193 = vmul.f32 %v187, 0.01
  %v194 = vsel %vm188, %v185, %v191
  %v195 = vsel %vm189, %v186, %v192
  %v196 = vsel %vm190, %v187, %v193
  %vm197 = vcmask 195584
  %v199 = vsel %vm197, %v49, 0
  %v202 = vsel %vm197, %v50, 0
  %204 = vmatpush.msra.mxu0 0.0
  %205 = vmatpush.msra.mxu0 0.0
  %206 = vmatpush.msra.mxu0 0.0
  %207 = vmatpush.msra.mxu0 0.0
  %208 = vmatpush.msra.mxu0 0.0
  %209 = vmatpush.msra.mxu0 0.0
  %210 = vmatpush.msra.mxu0 0.0
  %211 = vmatpush.msra.mxu0 0.0
  %212 = vmatpush.msra.mxu0 0.0
  %213 = vmatpush.msra.mxu0 0.0
  %214 = vmatpush.msra.mxu0 0.0
  %215 = vmatpush.msra.mxu0 0.0
  %216 = vmatpush.msra.mxu0 0.0
  %217 = vmatpush.msra.mxu0 %v196
  %218 = vmatpush.msra.mxu0 %v195
  %219 = vmatpush.msra.mxu0 %v194
  %220 = vmatmul.f32.gmra.mxu0 %v199
  %v221 = vpop.f32.mrf.mxu0
  %v222 = vadd.f32 0.0, %v221
  %223 = vmatmul.f32.gmra.mxu0 %v202
  %v224 = vpop.f32.mrf.mxu0
  %v225 = vadd.f32 0.0, %v224
  %226 = vdwg.mxu0
  %v227 = vld [vmem:[%s6] sm:$0xff]
  %v228 = vld [vmem:[%s6 + $0x8] sm:$0xff]
  %v229 = vld [vmem:[%s6 + $0x10] sm:$0xff]
  %v230 = vld [vmem:[%s6 + $0x18] sm:$0xff]
  %v231 = vld [vmem:[%s7] sm:$0xff]
  %v232 = vld [vmem:[%s7 + $0x8] sm:$0xff]
  %v234 = vsel %vm54, %v222, 0
  %v237 = vsel %vm54, %v225, 0
  %239 = vmatpush.msra.mxu0 0.0
  %240 = vmatpush.msra.mxu0 0.0
  %241 = vmatpush.msra.mxu0 0.0
  %242 = vmatpush.msra.mxu0 0.0
  %243 = vmatpush.msra.mxu0 0.0
  %244 = vmatpush.msra.mxu0 0.0
  %245 = vmatpush.msra.mxu0 0.0
  %246 = vmatpush.msra.mxu0 0.0
  %247 = vmatpush.msra.mxu0 0.0
  %248 = vmatpush.msra.mxu0 0.0
  %249 = vmatpush.msra.mxu0 0.0
  %250 = vmatpush.msra.mxu0 0.0
  %251 = vmatpush.msra.mxu0 0.0
  %252 = vmatpush.msra.mxu0 0.0
  %253 = vmatpush.msra.mxu0 %v232
  %254 = vmatpush.msra.mxu0 %v231
  %255 = vmatmul.f32.gmra.mxu0 %v234
  %v256 = vpop.f32.mrf.mxu0
  %v257 = vadd.f32 0.0, %v256
  %258 = vmatmul.f32.gmra.mxu0 %v237
  %v259 = vpop.f32.mrf.mxu0
  %v260 = vadd.f32 0.0, %v259
  %261 = vdwg.mxu0
  %v263 = vsel %vm114, %v44, 0
  %v266 = vsel %vm114, %v45, 0
  %268 = vmatpush.msra.mxu0 0.0
  %269 = vmatpush.msra.mxu0 0.0
  %270 = vmatpush.msra.mxu0 0.0
  %271 = vmatpush.msra.mxu0 0.0
  %272 = vmatpush.msra.mxu0 0.0
  %273 = vmatpush.msra.mxu0 0.0
  %274 = vmatpush.msra.mxu0 0.0
  %275 = vmatpush.msra.mxu0 0.0
  %276 = vmatpush.msra.mxu0 0.0
  %277 = vmatpush.msra.mxu0 0.0
  %278 = vmatpush.msra.mxu0 0.0
  %279 = vmatpush.msra.mxu0 0.0
  %280 = vmatpush.msra.mxu0 %v230
  %281 = vmatpush.msra.mxu0 %v229
  %282 = vmatpush.msra.mxu0 %v228
  %283 = vmatpush.msra.mxu0 %v227
  %284 = vmatmul.f32.gmra.mxu0 %v263
  %v285 = vpop.f32.mrf.mxu0
  %v286 = vadd.f32 %v257, %v285
  %287 = vmatmul.f32.gmra.mxu0 %v266
  %v288 = vpop.f32.mrf.mxu0
  %v289 = vadd.f32 %v260, %v288
  %290 = vdwg.mxu0
  %v291 = vld [vmem:[%s8] sm:$0x1]
  %v293 = vperm.slane %v291, 0
  %v295 = vadd.f32 %v286, %v293
  %v296 = vadd.f32 %v289, %v293
  %v297 = vmax.f32 %v295, 0.0
  %v298 = vmax.f32 %v296, 0.0
  %299 = vmatpush.msra.mxu0 0.0
  %300 = vmatpush.msra.mxu0 0.0
  %301 = vmatpush.msra.mxu0 0.0
  %302 = vmatpush.msra.mxu0 0.0
  %303 = vmatpush.msra.mxu0 0.0
  %304 = vmatpush.msra.mxu0 0.0
  %305 = vmatpush.msra.mxu0 0.0
  %306 = vmatpush.msra.mxu0 0.0
  %307 = vmatpush.msra.mxu0 0.0
  %308 = vmatpush.msra.mxu0 0.0
  %309 = vmatpush.msra.mxu0 0.0
  %310 = vmatpush.msra.mxu0 0.0
  %311 = vmatpush.msra.mxu0 0.0
  %312 = vmatpush.msra.mxu0 0.0
  %313 = vmatpush.msra.mxu0 %v298
  %314 = vmatpush.msra.mxu0 %v297
  %315 = vmatmul.f32.gmra.mxu0 %v56
  %v316 = vpop.f32.mrf.mxu0
  %v317 = vadd.f32 0.0, %v316
  %318 = vmatmul.f32.gmra.mxu0 %v59
  %v319 = vpop.f32.mrf.mxu0
  %v320 = vadd.f32 0.0, %v319
  %321 = vmatmul.f32.gmra.mxu0 %v62
  %v322 = vpop.f32.mrf.mxu0
  %v323 = vadd.f32 0.0, %v322
  %324 = vdwg.mxu0
  %s325 = scalar_lea.vmem %s4, 32
  %v326 = vld [vmem:[%s325] sm:$0xff]
  %v327 = vld [vmem:[%s325 + $0x8] sm:$0xff]
  %v328 = vld [vmem:[%s325 + $0x10] sm:$0xff]
  %v329 = vld [vmem:[%s325 + $0x18] sm:$0xff]
  %s330 = scalar_lea.vmem %s5, 4
  %v331 = vld [vmem:[%s330] sm:$0x7]
  %v332 = vperm.slane %v331, 0
  %v333 = vmul.f32 %v98, %v332
  %v334 = vmul.f32 %v103, %v332
  %v335 = vmul.f32 %v108, %v332
  %v337 = vsel %vm114, %v317, 0
  %v340 = vsel %vm114, %v320, 0
  %v343 = vsel %vm114, %v323, 0
  %345 = vmatpush.msra.mxu0 0.0
  %346 = vmatpush.msra.mxu0 0.0
  %347 = vmatpush.msra.mxu0 0.0
  %348 = vmatpush.msra.mxu0 0.0
  %349 = vmatpush.msra.mxu0 0.0
  %350 = vmatpush.msra.mxu0 0.0
  %351 = vmatpush.msra.mxu0 0.0
  %352 = vmatpush.msra.mxu0 0.0
  %353 = vmatpush.msra.mxu0 0.0
  %354 = vmatpush.msra.mxu0 0.0
  %355 = vmatpush.msra.mxu0 0.0
  %356 = vmatpush.msra.mxu0 0.0
  %357 = vmatpush.msra.mxu0 %v329
  %358 = vmatpush.msra.mxu0 %v328
  %359 = vmatpush.msra.mxu0 %v327
  %360 = vmatpush.msra.mxu0 %v326
  %361 = vmatmul.f32.gmra.mxu0 %v337
  %v362 = vpop.f32.mrf.mxu0
  %v363 = vadd.f32 %v333, %v362
  %364 = vmatmul.f32.gmra.mxu0 %v340
  %v365 = vpop.f32.mrf.mxu0
  %v366 = vadd.f32 %v334, %v365
  %367 = vmatmul.f32.gmra.mxu0 %v343
  %v368 = vpop.f32.mrf.mxu0
  %v369 = vadd.f32 %v335, %v368
  %370 = vdwg.mxu0
  %v371 = vperm.slane %v331, 1
  %v372 = vmul.f32 %v152, %v371
  %v373 = vmul.f32 %v156, %v371
  %v374 = vmul.f32 %v160, %v371
  %v375 = vadd.f32 %v363, %v372
  %v376 = vadd.f32 %v366, %v373
  %v377 = vadd.f32 %v369, %v374
  %v378 = vperm.slane %v331, 2
  %v379 = vmul.f32 %v171, %v378
  %v380 = vmul.f32 %v175, %v378
  %v381 = vmul.f32 %v179, %v378
  %v382 = vadd.f32 %v375, %v379
  %v383 = vadd.f32 %v376, %v380
  %v384 = vadd.f32 %v377, %v381
  %vm385 = vcmp.ge.f32.partialorder %v382, 0.0
  %vm386 = vcmp.ge.f32.partialorder %v383, 0.0
  %vm387 = vcmp.ge.f32.partialorder %v384, 0.0
  %v388 = vmul.f32 %v382, 0.01
  %v389 = vmul.f32 %v383, 0.01
  %v390 = vmul.f32 %v384, 0.01
  %v391 = vsel %vm385, %v382, %v388
  %v392 = vsel %vm386, %v383, %v389
  %v393 = vsel %vm387, %v384, %v390
  %394 = vmatpush.msra.mxu0 0.0
  %395 = vmatpush.msra.mxu0 0.0
  %396 = vmatpush.msra.mxu0 0.0
  %397 = vmatpush.msra.mxu0 0.0
  %398 = vmatpush.msra.mxu0 0.0
  %399 = vmatpush.msra.mxu0 0.0
  %400 = vmatpush.msra.mxu0 0.0
  %401 = vmatpush.msra.mxu0 0.0
  %402 = vmatpush.msra.mxu0 0.0
  %403 = vmatpush.msra.mxu0 0.0
  %404 = vmatpush.msra.mxu0 0.0
  %405 = vmatpush.msra.mxu0 0.0
  %406 = vmatpush.msra.mxu0 0.0
  %407 = vmatpush.msra.mxu0 %v393
  %408 = vmatpush.msra.mxu0 %v392
  %409 = vmatpush.msra.mxu0 %v391
  %410 = vmatmul.f32.gmra.mxu0 %v199
  %v411 = vpop.f32.mrf.mxu0
  %v412 = vadd.f32 0.0, %v411
  %413 = vmatmul.f32.gmra.mxu0 %v202
  %v414 = vpop.f32.mrf.mxu0
  %v415 = vadd.f32 0.0, %v414
  %416 = vdwg.mxu0
  %s417 = scalar_lea.vmem %s6, 32
  %v418 = vld [vmem:[%s417] sm:$0xff]
  %v419 = vld [vmem:[%s417 + $0x8] sm:$0xff]
  %v420 = vld [vmem:[%s417 + $0x10] sm:$0xff]
  %v421 = vld [vmem:[%s417 + $0x18] sm:$0xff]
  %s422 = scalar_lea.vmem %s7, 16
  %v423 = vld [vmem:[%s422] sm:$0xff]
  %v424 = vld [vmem:[%s422 + $0x8] sm:$0xff]
  %v426 = vsel %vm54, %v412, 0
  %v429 = vsel %vm54, %v415, 0
  %431 = vmatpush.msra.mxu0 0.0
  %432 = vmatpush.msra.mxu0 0.0
  %433 = vmatpush.msra.mxu0 0.0
  %434 = vmatpush.msra.mxu0 0.0
  %435 = vmatpush.msra.mxu0 0.0
  %436 = vmatpush.msra.mxu0 0.0
  %437 = vmatpush.msra.mxu0 0.0
  %438 = vmatpush.msra.mxu0 0.0
  %439 = vmatpush.msra.mxu0 0.0
  %440 = vmatpush.msra.mxu0 0.0
  %441 = vmatpush.msra.mxu0 0.0
  %442 = vmatpush.msra.mxu0 0.0
  %443 = vmatpush.msra.mxu0 0.0
  %444 = vmatpush.msra.mxu0 0.0
  %445 = vmatpush.msra.mxu0 %v424
  %446 = vmatpush.msra.mxu0 %v423
  %447 = vmatmul.f32.gmra.mxu0 %v426
  %v448 = vpop.f32.mrf.mxu0
  %v449 = vadd.f32 0.0, %v448
  %450 = vmatmul.f32.gmra.mxu0 %v429
  %v451 = vpop.f32.mrf.mxu0
  %v452 = vadd.f32 0.0, %v451
  %453 = vdwg.mxu0
  %v455 = vsel %vm114, %v297, 0
  %v458 = vsel %vm114, %v298, 0
  %460 = vmatpush.msra.mxu0 0.0
  %461 = vmatpush.msra.mxu0 0.0
  %462 = vmatpush.msra.mxu0 0.0
  %463 = vmatpush.msra.mxu0 0.0
  %464 = vmatpush.msra.mxu0 0.0
  %465 = vmatpush.msra.mxu0 0.0
  %466 = vmatpush.msra.mxu0 0.0
  %467 = vmatpush.msra.mxu0 0.0
  %468 = vmatpush.msra.mxu0 0.0
  %469 = vmatpush.msra.mxu0 0.0
  %470 = vmatpush.msra.mxu0 0.0
  %471 = vmatpush.msra.mxu0 0.0
  %472 = vmatpush.msra.mxu0 %v421
  %473 = vmatpush.msra.mxu0 %v420
  %474 = vmatpush.msra.mxu0 %v419
  %475 = vmatpush.msra.mxu0 %v418
  %476 = vmatmul.f32.gmra.mxu0 %v455
  %v477 = vpop.f32.mrf.mxu0
  %v478 = vadd.f32 %v449, %v477
  %479 = vmatmul.f32.gmra.mxu0 %v458
  %v480 = vpop.f32.mrf.mxu0
  %v481 = vadd.f32 %v452, %v480
  %482 = vdwg.mxu0
  %s483 = scalar_lea.vmem %s8, 1
  %v484 = vld [vmem:[%s483] sm:$0x1]
  %v486 = vperm.slane %v484, 0
  %v488 = vadd.f32 %v478, %v486
  %v489 = vadd.f32 %v481, %v486
  %v490 = vmax.f32 %v488, 0.0
  %v491 = vmax.f32 %v489, 0.0
  %492 = vmatpush.msra.mxu0 0.0
  %493 = vmatpush.msra.mxu0 0.0
  %494 = vmatpush.msra.mxu0 0.0
  %495 = vmatpush.msra.mxu0 0.0
  %496 = vmatpush.msra.mxu0 0.0
  %497 = vmatpush.msra.mxu0 0.0
  %498 = vmatpush.msra.mxu0 0.0
  %499 = vmatpush.msra.mxu0 0.0
  %500 = vmatpush.msra.mxu0 0.0
  %501 = vmatpush.msra.mxu0 0.0
  %502 = vmatpush.msra.mxu0 0.0
  %503 = vmatpush.msra.mxu0 0.0
  %504 = vmatpush.msra.mxu0 0.0
  %505 = vmatpush.msra.mxu0 0.0
  %506 = vmatpush.msra.mxu0 %v491
  %507 = vmatpush.msra.mxu0 %v490
  %508 = vmatmul.f32.gmra.mxu0 %v56
  %v509 = vpop.f32.mrf.mxu0
  %v510 = vadd.f32 0.0, %v509
  %511 = vmatmul.f32.gmra.mxu0 %v59
  %v512 = vpop.f32.mrf.mxu0
  %v513 = vadd.f32 0.0, %v512
  %514 = vmatmul.f32.gmra.mxu0 %v62
  %v515 = vpop.f32.mrf.mxu0
  %v516 = vadd.f32 0.0, %v515
  %517 = vdwg.mxu0
  %s518 = scalar_lea.vmem %s4, 64
  %v519 = vld [vmem:[%s518] sm:$0xff]
  %v520 = vld [vmem:[%s518 + $0x8] sm:$0xff]
  %v521 = vld [vmem:[%s518 + $0x10] sm:$0xff]
  %v522 = vld [vmem:[%s518 + $0x18] sm:$0xff]
  %s523 = scalar_lea.vmem %s5, 8
  %v524 = vld [vmem:[%s523] sm:$0x7]
  %v525 = vperm.slane %v524, 0
  %v526 = vmul.f32 %v98, %v525
  %v527 = vmul.f32 %v103, %v525
  %v528 = vmul.f32 %v108, %v525
  %v530 = vsel %vm114, %v510, 0
  %v533 = vsel %vm114, %v513, 0
  %v536 = vsel %vm114, %v516, 0
  %538 = vmatpush.msra.mxu0 0.0
  %539 = vmatpush.msra.mxu0 0.0
  %540 = vmatpush.msra.mxu0 0.0
  %541 = vmatpush.msra.mxu0 0.0
  %542 = vmatpush.msra.mxu0 0.0
  %543 = vmatpush.msra.mxu0 0.0
  %544 = vmatpush.msra.mxu0 0.0
  %545 = vmatpush.msra.mxu0 0.0
  %546 = vmatpush.msra.mxu0 0.0
  %547 = vmatpush.msra.mxu0 0.0
  %548 = vmatpush.msra.mxu0 0.0
  %549 = vmatpush.msra.mxu0 0.0
  %550 = vmatpush.msra.mxu0 %v522
  %551 = vmatpush.msra.mxu0 %v521
  %552 = vmatpush.msra.mxu0 %v520
  %553 = vmatpush.msra.mxu0 %v519
  %554 = vmatmul.f32.gmra.mxu0 %v530
  %v555 = vpop.f32.mrf.mxu0
  %v556 = vadd.f32 %v526, %v555
  %557 = vmatmul.f32.gmra.mxu0 %v533
  %v558 = vpop.f32.mrf.mxu0
  %v559 = vadd.f32 %v527, %v558
  %560 = vmatmul.f32.gmra.mxu0 %v536
  %v561 = vpop.f32.mrf.mxu0
  %v562 = vadd.f32 %v528, %v561
  %563 = vdwg.mxu0
  %v564 = vperm.slane %v524, 1
  %v565 = vmul.f32 %v152, %v564
  %v566 = vmul.f32 %v156, %v564
  %v567 = vmul.f32 %v160, %v564
  %v568 = vadd.f32 %v556, %v565
  %v569 = vadd.f32 %v559, %v566
  %v570 = vadd.f32 %v562, %v567
  %v571 = vperm.slane %v524, 2
  %v572 = vmul.f32 %v171, %v571
  %v573 = vmul.f32 %v175, %v571
  %v574 = vmul.f32 %v179, %v571
  %v575 = vadd.f32 %v568, %v572
  %v576 = vadd.f32 %v569, %v573
  %v577 = vadd.f32 %v570, %v574
  %vm578 = vcmp.ge.f32.partialorder %v575, 0.0
  %vm579 = vcmp.ge.f32.partialorder %v576, 0.0
  %vm580 = vcmp.ge.f32.partialorder %v577, 0.0
  %v581 = vmul.f32 %v575, 0.01
  %v582 = vmul.f32 %v576, 0.01
  %v583 = vmul.f32 %v577, 0.01
  %v584 = vsel %vm578, %v575, %v581
  %v585 = vsel %vm579, %v576, %v582
  %v586 = vsel %vm580, %v577, %v583
  %587 = vmatpush.msra.mxu0 0.0
  %588 = vmatpush.msra.mxu0 0.0
  %589 = vmatpush.msra.mxu0 0.0
  %590 = vmatpush.msra.mxu0 0.0
  %591 = vmatpush.msra.mxu0 0.0
  %592 = vmatpush.msra.mxu0 0.0
  %593 = vmatpush.msra.mxu0 0.0
  %594 = vmatpush.msra.mxu0 0.0
  %595 = vmatpush.msra.mxu0 0.0
  %596 = vmatpush.msra.mxu0 0.0
  %597 = vmatpush.msra.mxu0 0.0
  %598 = vmatpush.msra.mxu0 0.0
  %599 = vmatpush.msra.mxu0 0.0
  %600 = vmatpush.msra.mxu0 %v586
  %601 = vmatpush.msra.mxu0 %v585
  %602 = vmatpush.msra.mxu0 %v584
  %603 = vmatmul.f32.gmra.mxu0 %v199
  %v604 = vpop.f32.mrf.mxu0
  %v605 = vadd.f32 0.0, %v604
  %606 = vmatmul.f32.gmra.mxu0 %v202
  %v607 = vpop.f32.mrf.mxu0
  %v608 = vadd.f32 0.0, %v607
  %609 = vdwg.mxu0
  %s610 = scalar_lea.vmem %s6, 64
  %v611 = vld [vmem:[%s610] sm:$0xff]
  %v612 = vld [vmem:[%s610 + $0x8] sm:$0xff]
  %v613 = vld [vmem:[%s610 + $0x10] sm:$0xff]
  %v614 = vld [vmem:[%s610 + $0x18] sm:$0xff]
  %s615 = scalar_lea.vmem %s7, 32
  %v616 = vld [vmem:[%s615] sm:$0xff]
  %v617 = vld [vmem:[%s615 + $0x8] sm:$0xff]
  %v619 = vsel %vm54, %v605, 0
  %v622 = vsel %vm54, %v608, 0
  %624 = vmatpush.msra.mxu0 0.0
  %625 = vmatpush.msra.mxu0 0.0
  %626 = vmatpush.msra.mxu0 0.0
  %627 = vmatpush.msra.mxu0 0.0
  %628 = vmatpush.msra.mxu0 0.0
  %629 = vmatpush.msra.mxu0 0.0
  %630 = vmatpush.msra.mxu0 0.0
  %631 = vmatpush.msra.mxu0 0.0
  %632 = vmatpush.msra.mxu0 0.0
  %633 = vmatpush.msra.mxu0 0.0
  %634 = vmatpush.msra.mxu0 0.0
  %635 = vmatpush.msra.mxu0 0.0
  %636 = vmatpush.msra.mxu0 0.0
  %637 = vmatpush.msra.mxu0 0.0
  %638 = vmatpush.msra.mxu0 %v617
  %639 = vmatpush.msra.mxu0 %v616
  %640 = vmatmul.f32.gmra.mxu0 %v619
  %v641 = vpop.f32.mrf.mxu0
  %v642 = vadd.f32 0.0, %v641
  %643 = vmatmul.f32.gmra.mxu0 %v622
  %v644 = vpop.f32.mrf.mxu0
  %v645 = vadd.f32 0.0, %v644
  %646 = vdwg.mxu0
  %v648 = vsel %vm114, %v490, 0
  %v651 = vsel %vm114, %v491, 0
  %653 = vmatpush.msra.mxu0 0.0
  %654 = vmatpush.msra.mxu0 0.0
  %655 = vmatpush.msra.mxu0 0.0
  %656 = vmatpush.msra.mxu0 0.0
  %657 = vmatpush.msra.mxu0 0.0
  %658 = vmatpush.msra.mxu0 0.0
  %659 = vmatpush.msra.mxu0 0.0
  %660 = vmatpush.msra.mxu0 0.0
  %661 = vmatpush.msra.mxu0 0.0
  %662 = vmatpush.msra.mxu0 0.0
  %663 = vmatpush.msra.mxu0 0.0
  %664 = vmatpush.msra.mxu0 0.0
  %665 = vmatpush.msra.mxu0 %v614
  %666 = vmatpush.msra.mxu0 %v613
  %667 = vmatpush.msra.mxu0 %v612
  %668 = vmatpush.msra.mxu0 %v611
  %669 = vmatmul.f32.gmra.mxu0 %v648
  %v670 = vpop.f32.mrf.mxu0
  %v671 = vadd.f32 %v642, %v670
  %672 = vmatmul.f32.gmra.mxu0 %v651
  %v673 = vpop.f32.mrf.mxu0
  %v674 = vadd.f32 %v645, %v673
  %675 = vdwg.mxu0
  %s676 = scalar_lea.vmem %s8, 2
  %v677 = vld [vmem:[%s676] sm:$0x1]
  %v679 = vperm.slane %v677, 0
  %v681 = vadd.f32 %v671, %v679
  %v682 = vadd.f32 %v674, %v679
  %v683 = vmax.f32 %v681, 0.0
  %v684 = vmax.f32 %v682, 0.0
  %685 = vmatpush.msra.mxu0 0.0
  %686 = vmatpush.msra.mxu0 0.0
  %687 = vmatpush.msra.mxu0 0.0
  %688 = vmatpush.msra.mxu0 0.0
  %689 = vmatpush.msra.mxu0 0.0
  %690 = vmatpush.msra.mxu0 0.0
  %691 = vmatpush.msra.mxu0 0.0
  %692 = vmatpush.msra.mxu0 0.0
  %693 = vmatpush.msra.mxu0 0.0
  %694 = vmatpush.msra.mxu0 0.0
  %695 = vmatpush.msra.mxu0 0.0
  %696 = vmatpush.msra.mxu0 0.0
  %697 = vmatpush.msra.mxu0 0.0
  %698 = vmatpush.msra.mxu0 0.0
  %699 = vmatpush.msra.mxu0 %v684
  %700 = vmatpush.msra.mxu0 %v683
  %701 = vmatmul.f32.gmra.mxu0 %v56
  %v702 = vpop.f32.mrf.mxu0
  %v703 = vadd.f32 0.0, %v702
  %704 = vmatmul.f32.gmra.mxu0 %v59
  %v705 = vpop.f32.mrf.mxu0
  %v706 = vadd.f32 0.0, %v705
  %707 = vmatmul.f32.gmra.mxu0 %v62
  %v708 = vpop.f32.mrf.mxu0
  %v709 = vadd.f32 0.0, %v708
  %710 = vdwg.mxu0
  %s711 = scalar_lea.vmem %s4, 96
  %v712 = vld [vmem:[%s711] sm:$0xff]
  %v713 = vld [vmem:[%s711 + $0x8] sm:$0xff]
  %v714 = vld [vmem:[%s711 + $0x10] sm:$0xff]
  %v715 = vld [vmem:[%s711 + $0x18] sm:$0xff]
  %s716 = scalar_lea.vmem %s5, 12
  %v717 = vld [vmem:[%s716] sm:$0x7]
  %v718 = vperm.slane %v717, 0
  %v719 = vmul.f32 %v98, %v718
  %v720 = vmul.f32 %v103, %v718
  %v721 = vmul.f32 %v108, %v718
  %v723 = vsel %vm114, %v703, 0
  %v726 = vsel %vm114, %v706, 0
  %v729 = vsel %vm114, %v709, 0
  %731 = vmatpush.msra.mxu0 0.0
  %732 = vmatpush.msra.mxu0 0.0
  %733 = vmatpush.msra.mxu0 0.0
  %734 = vmatpush.msra.mxu0 0.0
  %735 = vmatpush.msra.mxu0 0.0
  %736 = vmatpush.msra.mxu0 0.0
  %737 = vmatpush.msra.mxu0 0.0
  %738 = vmatpush.msra.mxu0 0.0
  %739 = vmatpush.msra.mxu0 0.0
  %740 = vmatpush.msra.mxu0 0.0
  %741 = vmatpush.msra.mxu0 0.0
  %742 = vmatpush.msra.mxu0 0.0
  %743 = vmatpush.msra.mxu0 %v715
  %744 = vmatpush.msra.mxu0 %v714
  %745 = vmatpush.msra.mxu0 %v713
  %746 = vmatpush.msra.mxu0 %v712
  %747 = vmatmul.f32.gmra.mxu0 %v723
  %v748 = vpop.f32.mrf.mxu0
  %v749 = vadd.f32 %v719, %v748
  %750 = vmatmul.f32.gmra.mxu0 %v726
  %v751 = vpop.f32.mrf.mxu0
  %v752 = vadd.f32 %v720, %v751
  %753 = vmatmul.f32.gmra.mxu0 %v729
  %v754 = vpop.f32.mrf.mxu0
  %v755 = vadd.f32 %v721, %v754
  %756 = vdwg.mxu0
  %v757 = vperm.slane %v717, 1
  %v758 = vmul.f32 %v152, %v757
  %v759 = vmul.f32 %v156, %v757
  %v760 = vmul.f32 %v160, %v757
  %v761 = vadd.f32 %v749, %v758
  %v762 = vadd.f32 %v752, %v759
  %v763 = vadd.f32 %v755, %v760
  %v764 = vperm.slane %v717, 2
  %v765 = vmul.f32 %v171, %v764
  %v766 = vmul.f32 %v175, %v764
  %v767 = vmul.f32 %v179, %v764
  %v768 = vadd.f32 %v761, %v765
  %v769 = vadd.f32 %v762, %v766
  %v770 = vadd.f32 %v763, %v767
  %vm771 = vcmp.ge.f32.partialorder %v768, 0.0
  %vm772 = vcmp.ge.f32.partialorder %v769, 0.0
  %vm773 = vcmp.ge.f32.partialorder %v770, 0.0
  %v774 = vmul.f32 %v768, 0.01
  %v775 = vmul.f32 %v769, 0.01
  %v776 = vmul.f32 %v770, 0.01
  %v777 = vsel %vm771, %v768, %v774
  %v778 = vsel %vm772, %v769, %v775
  %v779 = vsel %vm773, %v770, %v776
  %780 = vmatpush.msra.mxu0 0.0
  %781 = vmatpush.msra.mxu0 0.0
  %782 = vmatpush.msra.mxu0 0.0
  %783 = vmatpush.msra.mxu0 0.0
  %784 = vmatpush.msra.mxu0 0.0
  %785 = vmatpush.msra.mxu0 0.0
  %786 = vmatpush.msra.mxu0 0.0
  %787 = vmatpush.msra.mxu0 0.0
  %788 = vmatpush.msra.mxu0 0.0
  %789 = vmatpush.msra.mxu0 0.0
  %790 = vmatpush.msra.mxu0 0.0
  %791 = vmatpush.msra.mxu0 0.0
  %792 = vmatpush.msra.mxu0 0.0
  %793 = vmatpush.msra.mxu0 %v779
  %794 = vmatpush.msra.mxu0 %v778
  %795 = vmatpush.msra.mxu0 %v777
  %796 = vmatmul.f32.gmra.mxu0 %v199
  %v797 = vpop.f32.mrf.mxu0
  %v798 = vadd.f32 0.0, %v797
  %799 = vmatmul.f32.gmra.mxu0 %v202
  %v800 = vpop.f32.mrf.mxu0
  %v801 = vadd.f32 0.0, %v800
  %802 = vdwg.mxu0
  %s803 = scalar_lea.vmem %s6, 96
  %v804 = vld [vmem:[%s803] sm:$0xff]
  %v805 = vld [vmem:[%s803 + $0x8] sm:$0xff]
  %v806 = vld [vmem:[%s803 + $0x10] sm:$0xff]
  %v807 = vld [vmem:[%s803 + $0x18] sm:$0xff]
  %s808 = scalar_lea.vmem %s7, 48
  %v809 = vld [vmem:[%s808] sm:$0xff]
  %v810 = vld [vmem:[%s808 + $0x8] sm:$0xff]
  %v812 = vsel %vm54, %v798, 0
  %v815 = vsel %vm54, %v801, 0
  %817 = vmatpush.msra.mxu0 0.0
  %818 = vmatpush.msra.mxu0 0.0
  %819 = vmatpush.msra.mxu0 0.0
  %820 = vmatpush.msra.mxu0 0.0
  %821 = vmatpush.msra.mxu0 0.0
  %822 = vmatpush.msra.mxu0 0.0
  %823 = vmatpush.msra.mxu0 0.0
  %824 = vmatpush.msra.mxu0 0.0
  %825 = vmatpush.msra.mxu0 0.0
  %826 = vmatpush.msra.mxu0 0.0
  %827 = vmatpush.msra.mxu0 0.0
  %828 = vmatpush.msra.mxu0 0.0
  %829 = vmatpush.msra.mxu0 0.0
  %830 = vmatpush.msra.mxu0 0.0
  %831 = vmatpush.msra.mxu0 %v810
  %832 = vmatpush.msra.mxu0 %v809
  %833 = vmatmul.f32.gmra.mxu0 %v812
  %v834 = vpop.f32.mrf.mxu0
  %v835 = vadd.f32 0.0, %v834
  %836 = vmatmul.f32.gmra.mxu0 %v815
  %v837 = vpop.f32.mrf.mxu0
  %v838 = vadd.f32 0.0, %v837
  %839 = vdwg.mxu0
  %v841 = vsel %vm114, %v683, 0
  %v844 = vsel %vm114, %v684, 0
  %846 = vmatpush.msra.mxu0 0.0
  %847 = vmatpush.msra.mxu0 0.0
  %848 = vmatpush.msra.mxu0 0.0
  %849 = vmatpush.msra.mxu0 0.0
  %850 = vmatpush.msra.mxu0 0.0
  %851 = vmatpush.msra.mxu0 0.0
  %852 = vmatpush.msra.mxu0 0.0
  %853 = vmatpush.msra.mxu0 0.0
  %854 = vmatpush.msra.mxu0 0.0
  %855 = vmatpush.msra.mxu0 0.0
  %856 = vmatpush.msra.mxu0 0.0
  %857 = vmatpush.msra.mxu0 0.0
  %858 = vmatpush.msra.mxu0 %v807
  %859 = vmatpush.msra.mxu0 %v806
  %860 = vmatpush.msra.mxu0 %v805
  %861 = vmatpush.msra.mxu0 %v804
  %862 = vmatmul.f32.gmra.mxu0 %v841
  %v863 = vpop.f32.mrf.mxu0
  %v864 = vadd.f32 %v835, %v863
  %865 = vmatmul.f32.gmra.mxu0 %v844
  %v866 = vpop.f32.mrf.mxu0
  %v867 = vadd.f32 %v838, %v866
  %868 = vdwg.mxu0
  %s869 = scalar_lea.vmem %s8, 3
  %v870 = vld [vmem:[%s869] sm:$0x1]
  %v872 = vperm.slane %v870, 0
  %v874 = vadd.f32 %v864, %v872
  %v875 = vadd.f32 %v867, %v872
  %v876 = vmax.f32 %v874, 0.0
  %v877 = vmax.f32 %v875, 0.0
  %878 = vmatpush.msra.mxu0 0.0
  %879 = vmatpush.msra.mxu0 0.0
  %880 = vmatpush.msra.mxu0 0.0
  %881 = vmatpush.msra.mxu0 0.0
  %882 = vmatpush.msra.mxu0 0.0
  %883 = vmatpush.msra.mxu0 0.0
  %884 = vmatpush.msra.mxu0 0.0
  %885 = vmatpush.msra.mxu0 0.0
  %886 = vmatpush.msra.mxu0 0.0
  %887 = vmatpush.msra.mxu0 0.0
  %888 = vmatpush.msra.mxu0 0.0
  %889 = vmatpush.msra.mxu0 0.0
  %890 = vmatpush.msra.mxu0 0.0
  %891 = vmatpush.msra.mxu0 0.0
  %892 = vmatpush.msra.mxu0 %v877
  %893 = vmatpush.msra.mxu0 %v876
  %894 = vmatmul.f32.gmra.mxu0 %v56
  %v895 = vpop.f32.mrf.mxu0
  %v896 = vadd.f32 0.0, %v895
  %897 = vmatmul.f32.gmra.mxu0 %v59
  %v898 = vpop.f32.mrf.mxu0
  %v899 = vadd.f32 0.0, %v898
  %900 = vmatmul.f32.gmra.mxu0 %v62
  %v901 = vpop.f32.mrf.mxu0
  %v902 = vadd.f32 0.0, %v901
  %903 = vdwg.mxu0
  %s904 = scalar_lea.vmem %s4, 128
  %v905 = vld [vmem:[%s904] sm:$0xff]
  %v906 = vld [vmem:[%s904 + $0x8] sm:$0xff]
  %v907 = vld [vmem:[%s904 + $0x10] sm:$0xff]
  %v908 = vld [vmem:[%s904 + $0x18] sm:$0xff]
  %s909 = scalar_lea.vmem %s5, 16
  %v910 = vld [vmem:[%s909] sm:$0x7]
  %v911 = vperm.slane %v910, 0
  %v912 = vmul.f32 %v98, %v911
  %v913 = vmul.f32 %v103, %v911
  %v914 = vmul.f32 %v108, %v911
  %v916 = vsel %vm114, %v896, 0
  %v919 = vsel %vm114, %v899, 0
  %v922 = vsel %vm114, %v902, 0
  %924 = vmatpush.msra.mxu0 0.0
  %925 = vmatpush.msra.mxu0 0.0
  %926 = vmatpush.msra.mxu0 0.0
  %927 = vmatpush.msra.mxu0 0.0
  %928 = vmatpush.msra.mxu0 0.0
  %929 = vmatpush.msra.mxu0 0.0
  %930 = vmatpush.msra.mxu0 0.0
  %931 = vmatpush.msra.mxu0 0.0
  %932 = vmatpush.msra.mxu0 0.0
  %933 = vmatpush.msra.mxu0 0.0
  %934 = vmatpush.msra.mxu0 0.0
  %935 = vmatpush.msra.mxu0 0.0
  %936 = vmatpush.msra.mxu0 %v908
  %937 = vmatpush.msra.mxu0 %v907
  %938 = vmatpush.msra.mxu0 %v906
  %939 = vmatpush.msra.mxu0 %v905
  %940 = vmatmul.f32.gmra.mxu0 %v916
  %v941 = vpop.f32.mrf.mxu0
  %v942 = vadd.f32 %v912, %v941
  %943 = vmatmul.f32.gmra.mxu0 %v919
  %v944 = vpop.f32.mrf.mxu0
  %v945 = vadd.f32 %v913, %v944
  %946 = vmatmul.f32.gmra.mxu0 %v922
  %v947 = vpop.f32.mrf.mxu0
  %v948 = vadd.f32 %v914, %v947
  %949 = vdwg.mxu0
  %v950 = vperm.slane %v910, 1
  %v951 = vmul.f32 %v152, %v950
  %v952 = vmul.f32 %v156, %v950
  %v953 = vmul.f32 %v160, %v950
  %v954 = vadd.f32 %v942, %v951
  %v955 = vadd.f32 %v945, %v952
  %v956 = vadd.f32 %v948, %v953
  %v957 = vperm.slane %v910, 2
  %v958 = vmul.f32 %v171, %v957
  %v959 = vmul.f32 %v175, %v957
  %v960 = vmul.f32 %v179, %v957
  %v961 = vadd.f32 %v954, %v958
  %v962 = vadd.f32 %v955, %v959
  %v963 = vadd.f32 %v956, %v960
  %vm964 = vcmp.ge.f32.partialorder %v961, 0.0
  %vm965 = vcmp.ge.f32.partialorder %v962, 0.0
  %vm966 = vcmp.ge.f32.partialorder %v963, 0.0
  %v967 = vmul.f32 %v961, 0.01
  %v968 = vmul.f32 %v962, 0.01
  %v969 = vmul.f32 %v963, 0.01
  %v970 = vsel %vm964, %v961, %v967
  %v971 = vsel %vm965, %v962, %v968
  %v972 = vsel %vm966, %v963, %v969
  %973 = vmatpush.msra.mxu0 0.0
  %974 = vmatpush.msra.mxu0 0.0
  %975 = vmatpush.msra.mxu0 0.0
  %976 = vmatpush.msra.mxu0 0.0
  %977 = vmatpush.msra.mxu0 0.0
  %978 = vmatpush.msra.mxu0 0.0
  %979 = vmatpush.msra.mxu0 0.0
  %980 = vmatpush.msra.mxu0 0.0
  %981 = vmatpush.msra.mxu0 0.0
  %982 = vmatpush.msra.mxu0 0.0
  %983 = vmatpush.msra.mxu0 0.0
  %984 = vmatpush.msra.mxu0 0.0
  %985 = vmatpush.msra.mxu0 0.0
  %986 = vmatpush.msra.mxu0 %v972
  %987 = vmatpush.msra.mxu0 %v971
  %988 = vmatpush.msra.mxu0 %v970
  %989 = vmatmul.f32.gmra.mxu0 %v199
  %v990 = vpop.f32.mrf.mxu0
  %v991 = vadd.f32 0.0, %v990
  %992 = vmatmul.f32.gmra.mxu0 %v202
  %v993 = vpop.f32.mrf.mxu0
  %v994 = vadd.f32 0.0, %v993
  %995 = vdwg.mxu0
  %s996 = scalar_lea.vmem %s6, 128
  %v997 = vld [vmem:[%s996] sm:$0xff]
  %v998 = vld [vmem:[%s996 + $0x8] sm:$0xff]
  %v999 = vld [vmem:[%s996 + $0x10] sm:$0xff]
  %v1000 = vld [vmem:[%s996 + $0x18] sm:$0xff]
  %s1001 = scalar_lea.vmem %s7, 64
  %v1002 = vld [vmem:[%s1001] sm:$0xff]
  %v1003 = vld [vmem:[%s1001 + $0x8] sm:$0xff]
  %v1005 = vsel %vm54, %v991, 0
  %v1008 = vsel %vm54, %v994, 0
  %1010 = vmatpush.msra.mxu0 0.0
  %1011 = vmatpush.msra.mxu0 0.0
  %1012 = vmatpush.msra.mxu0 0.0
  %1013 = vmatpush.msra.mxu0 0.0
  %1014 = vmatpush.msra.mxu0 0.0
  %1015 = vmatpush.msra.mxu0 0.0
  %1016 = vmatpush.msra.mxu0 0.0
  %1017 = vmatpush.msra.mxu0 0.0
  %1018 = vmatpush.msra.mxu0 0.0
  %1019 = vmatpush.msra.mxu0 0.0
  %1020 = vmatpush.msra.mxu0 0.0
  %1021 = vmatpush.msra.mxu0 0.0
  %1022 = vmatpush.msra.mxu0 0.0
  %1023 = vmatpush.msra.mxu0 0.0
  %1024 = vmatpush.msra.mxu0 %v1003
  %1025 = vmatpush.msra.mxu0 %v1002
  %1026 = vmatmul.f32.gmra.mxu0 %v1005
  %v1027 = vpop.f32.mrf.mxu0
  %v1028 = vadd.f32 0.0, %v1027
  %1029 = vmatmul.f32.gmra.mxu0 %v1008
  %v1030 = vpop.f32.mrf.mxu0
  %v1031 = vadd.f32 0.0, %v1030
  %1032 = vdwg.mxu0
  %v1034 = vsel %vm114, %v876, 0
  %v1037 = vsel %vm114, %v877, 0
  %1039 = vmatpush.msra.mxu0 0.0
  %1040 = vmatpush.msra.mxu0 0.0
  %1041 = vmatpush.msra.mxu0 0.0
  %1042 = vmatpush.msra.mxu0 0.0
  %1043 = vmatpush.msra.mxu0 0.0
  %1044 = vmatpush.msra.mxu0 0.0
  %1045 = vmatpush.msra.mxu0 0.0
  %1046 = vmatpush.msra.mxu0 0.0
  %1047 = vmatpush.msra.mxu0 0.0
  %1048 = vmatpush.msra.mxu0 0.0
  %1049 = vmatpush.msra.mxu0 0.0
  %1050 = vmatpush.msra.mxu0 0.0
  %1051 = vmatpush.msra.mxu0 %v1000
  %1052 = vmatpush.msra.mxu0 %v999
  %1053 = vmatpush.msra.mxu0 %v998
  %1054 = vmatpush.msra.mxu0 %v997
  %1055 = vmatmul.f32.gmra.mxu0 %v1034
  %v1056 = vpop.f32.mrf.mxu0
  %v1057 = vadd.f32 %v1028, %v1056
  %1058 = vmatmul.f32.gmra.mxu0 %v1037
  %v1059 = vpop.f32.mrf.mxu0
  %v1060 = vadd.f32 %v1031, %v1059
  %1061 = vdwg.mxu0
  %s1062 = scalar_lea.vmem %s8, 4
  %v1063 = vld [vmem:[%s1062] sm:$0x1]
  %v1065 = vperm.slane %v1063, 0
  %v1067 = vadd.f32 %v1057, %v1065
  %v1068 = vadd.f32 %v1060, %v1065
  %v1069 = vmax.f32 %v1067, 0.0
  %v1070 = vmax.f32 %v1068, 0.0
  %v1071 = vld [vmem:[%s9] sm:$0xff]
  %v1072 = vld [vmem:[%s9 + $0x8] sm:$0xff]
  %v1073 = vld [vmem:[%s9 + $0x10] sm:$0xff]
  %v1074 = vld [vmem:[%s9 + $0x18] sm:$0xff]
  %v1075 = vld [vmem:[%s10] sm:$0x1]
  %v1077 = vperm.slane %v1075, 0
  %v1080 = vsel %vm114, %v1069, 0
  %v1083 = vsel %vm114, %v1070, 0
  %1085 = vmatpush.msra.mxu0 0.0
  %1086 = vmatpush.msra.mxu0 0.0
  %1087 = vmatpush.msra.mxu0 0.0
  %1088 = vmatpush.msra.mxu0 0.0
  %1089 = vmatpush.msra.mxu0 0.0
  %1090 = vmatpush.msra.mxu0 0.0
  %1091 = vmatpush.msra.mxu0 0.0
  %1092 = vmatpush.msra.mxu0 0.0
  %1093 = vmatpush.msra.mxu0 0.0
  %1094 = vmatpush.msra.mxu0 0.0
  %1095 = vmatpush.msra.mxu0 0.0
  %1096 = vmatpush.msra.mxu0 0.0
  %1097 = vmatpush.msra.mxu0 %v1074
  %1098 = vmatpush.msra.mxu0 %v1073
  %1099 = vmatpush.msra.mxu0 %v1072
  %1100 = vmatpush.msra.mxu0 %v1071
  %1101 = vmatmul.f32.gmra.mxu0 %v1080
  %v1102 = vpop.f32.mrf.mxu0
  %v1103 = vadd.f32 %v1077, %v1102
  %1104 = vmatmul.f32.gmra.mxu0 %v1083
  %v1105 = vpop.f32.mrf.mxu0
  %v1106 = vadd.f32 %v1077, %v1105
  %1107 = vdwg.mxu0
  %v1108 = vmax.f32 %v1103, 0.0
  %v1109 = vmax.f32 %v1106, 0.0
  %v1110 = vld [vmem:[%s11] sm:$0xff]
  %v1111 = vld [vmem:[%s11 + $0x8] sm:$0xff]
  %v1112 = vld [vmem:[%s11 + $0x10] sm:$0xff]
  %v1113 = vld [vmem:[%s11 + $0x18] sm:$0xff]
  %v1114 = vld [vmem:[%s12] sm:$0x1]
  %v1116 = vperm.slane %v1114, 0
  %v1119 = vsel %vm114, %v1108, 0
  %v1122 = vsel %vm114, %v1109, 0
  %1124 = vmatpush.msra.mxu0 0.0
  %1125 = vmatpush.msra.mxu0 0.0
  %1126 = vmatpush.msra.mxu0 0.0
  %1127 = vmatpush.msra.mxu0 0.0
  %1128 = vmatpush.msra.mxu0 0.0
  %1129 = vmatpush.msra.mxu0 0.0
  %1130 = vmatpush.msra.mxu0 0.0
  %1131 = vmatpush.msra.mxu0 0.0
  %1132 = vmatpush.msra.mxu0 0.0
  %1133 = vmatpush.msra.mxu0 0.0
  %1134 = vmatpush.msra.mxu0 0.0
  %1135 = vmatpush.msra.mxu0 0.0
  %1136 = vmatpush.msra.mxu0 %v1113
  %1137 = vmatpush.msra.mxu0 %v1112
  %1138 = vmatpush.msra.mxu0 %v1111
  %1139 = vmatpush.msra.mxu0 %v1110
  %1140 = vmatmul.f32.gmra.mxu0 %v1119
  %v1141 = vpop.f32.mrf.mxu0
  %v1142 = vadd.f32 %v1116, %v1141
  %1143 = vmatmul.f32.gmra.mxu0 %v1122
  %v1144 = vpop.f32.mrf.mxu0
  %v1145 = vadd.f32 %v1116, %v1144
  %1146 = vdwg.mxu0
  %vm1147 = vcmask 31744
  %1148 = vst.msk [vmem:[%s13] sm:$0xff] %vm1147, %v1142
  %1149 = vst.msk [vmem:[%s13 + $0x8] sm:$0xff] %vm1147, %v1145
  // Predicated region
  $region54: #{qgnn_forward.1} parent=0 // pred_check
    _
  $region55: #{qgnn_forward.1} parent=0 // pred_check_branch
    %1151 = sbr.rel (0) target = $region57
  $region56: #{qgnn_forward.1} parent=0 // pred_region
    _
  $region57: #{qgnn_forward.1} parent=0 // pred_fallthru
    _
  // Predicated region
  $region58: #{qgnn_forward.1} parent=0 // pred_check
    _
  $region59: #{qgnn_forward.1} parent=0 // pred_check_branch
    %1153 = sbr.rel (0) target = $region61
  $region60: #{qgnn_forward.1} parent=0 // pred_region
    _
  $region61: #{qgnn_forward.1} parent=0 // pred_fallthru
    _

</llo_original>
